<compile_context>
chip_gen: v7x
topology: tpu7x:2x2x1
jax: 0.10.0
libtpu: 0.0.40
codegen_flags: <defaults>
</compile_context>

<pallas_src>
import functools

import jax
import jax.numpy as jnp
from jax.experimental import pallas as pl
from jax.experimental.pallas import tpu as pltpu

LATENT_DIM = 128
DEC_CHANNELS = (512, 256, 128, 64, 32, 3)
DEC_ACTS = ("relu", "relu", "relu", "relu", "tanh")
_VMEM_LIMIT = 32 << 20  # safe on v5e/v6e (128 MiB) and v7x (64 MiB physical)


# ----------------------------------------------------------------------------
# Pallas kernels
# ----------------------------------------------------------------------------
def _deconv_kernel(hp_ref, w_ref, b_ref, o_ref, *, blk_b, blk_h, width, ci, n, act):
    """One (row-parity, row-tile) step of ConvTranspose2d(k=4,s=2,p=1)+act.

    hp_ref: [B, H+2, W+2, Ci]   zero-halo-padded input, fully VMEM resident
    w_ref:  [1, 6, Ci, N]       packed weights for this row parity (N = 2*Co)
    b_ref:  [1, N]
    o_ref:  [B, blk_h, 1, W, N] output block (column parity folded into N)
    """
    ph = pl.program_id(0)                       # output row parity
    t = pl.program_id(1)                        # row tile
    r0 = t * blk_h
    rows = blk_b * blk_h * width

    acc = jnp.zeros((rows, n), jnp.float32)
    for tr in range(2):                         # row taps: padded row r + ph + tr
        xr = hp_ref[:, pl.ds(r0 + ph + tr, blk_h), :, :]        # [B, bh, W+2, Ci]
        for tc in range(3):                     # col taps: padded col c + tc
            x = xr[:, :, tc:tc + width, :].reshape(rows, ci)
            acc = acc + jnp.dot(x, w_ref[0, tr * 3 + tc, :, :],
                                preferred_element_type=jnp.float32)
    acc = acc + b_ref[...]
    if act == "relu":
        acc = jnp.maximum(acc, 0.0)
    else:
        acc = jnp.tanh(acc)
    o_ref[...] = acc.reshape(o_ref.shape).astype(o_ref.dtype)


def _fused_head_kernel(x_ref, encw_ref, encb_ref, wmu_ref, bmu_ref,
                       wlv_ref, blv_ref, eps_ref, dfw_ref, dfb_ref,
                       mu_ref, lv_ref, h_ref):
    """Stand-in encoder + L2 norm + fc_mu/fc_logvar + reparameterize + decoder FC."""
    x = x_ref[...]                                              # bf16 [Bp, Fin]
    feat = jnp.dot(x, encw_ref[...],
                   preferred_element_type=jnp.float32) + encb_ref[...]
    # F.normalize(p=2, dim=1, eps=1e-12) — facenet-style 512-d embedding
    norm = jnp.sqrt(jnp.sum(feat * feat, axis=-1, keepdims=True))
    f = (feat / jnp.maximum(norm, 1e-12)).astype(jnp.bfloat16)
    mu = jnp.dot(f, wmu_ref[...], preferred_element_type=jnp.float32) + bmu_ref[...]
    lv = jnp.dot(f, wlv_ref[...], preferred_element_type=jnp.float32) + blv_ref[...]
    z = mu + eps_ref[...] * jnp.exp(0.5 * lv)                   # reparameterize
    mu_ref[...] = mu
    lv_ref[...] = lv
    h = jnp.dot(z.astype(jnp.bfloat16), dfw_ref[...],
                preferred_element_type=jnp.float32) + dfb_ref[...]
    h_ref[...] = jnp.maximum(h, 0.0).astype(h_ref.dtype)        # Linear -> ReLU


# ----------------------------------------------------------------------------
# Wrappers
# ----------------------------------------------------------------------------
def fused_encode_head_decfc(x_flat, enc_w, enc_b, wmu, bmu, wlv, blv, eps,
                            dfc_w, dfc_b):
    """encode -> (mu, logvar) -> z -> decoder Linear+ReLU, one pallas_call."""
    B, Fin = x_flat.shape
    F512 = enc_w.shape[1]
    L = wmu.shape[1]
    D = dfc_w.shape[1]
    Bp = max(8, ((B + 7) // 8) * 8)

    xp = x_flat.astype(jnp.bfloat16)
    ep = eps.astype(jnp.float32)
    if Bp != B:
        xp = jnp.pad(xp, ((0, Bp - B), (0, 0)))
        ep = jnp.pad(ep, ((0, Bp - B), (0, 0)))

    full = lambda shape: pl.BlockSpec(shape, lambda i: (0, 0))
    mu, logvar, h = pl.pallas_call(
        _fused_head_kernel,
        out_shape=(jax.ShapeDtypeStruct((Bp, L), jnp.float32),
                   jax.ShapeDtypeStruct((Bp, L), jnp.float32),
                   jax.ShapeDtypeStruct((Bp, D), jnp.bfloat16)),
        grid_spec=pltpu.PrefetchScalarGridSpec(
            num_scalar_prefetch=0,
            grid=(1,),
            in_specs=[
                full((Bp, Fin)),
                full((Fin, F512)), full((1, F512)),
                full((F512, L)), full((1, L)),
                full((F512, L)), full((1, L)),
                full((Bp, L)),
                full((L, D)), full((1, D)),
            ],
            out_specs=(full((Bp, L)), full((Bp, L)), full((Bp, D))),
        ),
        compiler_params=pltpu.CompilerParams(vmem_limit_bytes=_VMEM_LIMIT),
    )(xp, enc_w, enc_b, wmu, bmu, wlv, blv, ep, dfc_w, dfc_b)
    return mu[:B], logvar[:B], h[:B]


def conv_transpose2d(h, wpack, bias, act, out_dtype=jnp.bfloat16):
    """nn.ConvTranspose2d(k=4, s=2, p=1) + activation via sub-pixel tap-dots.

    h:     [B, H, W, Ci] NHWC activations (cast to bf16)
    wpack: [2, 6, Ci, 2*Co] bf16 packed weights (see _pack_deconv)
    bias:  [1, 2*Co] f32
    Returns [B, 2H, 2W, Co] in `out_dtype`.
    """
    B, H, W, Ci = h.shape
    N = wpack.shape[-1]
    co = N // 2

    # zero halo of 1 (borders of the transposed conv); small copy, ~input sized
    hp = jnp.pad(h.astype(jnp.bfloat16), ((0, 0), (1, 1), (1, 1), (0, 0)))

    bh = H
    while bh % 2 == 0 and B * bh * W > 2048:    # row tile: <= ~2048 matmul rows/step
        bh //= 2
    T = H // bh

    out = pl.pallas_call(
        functools.partial(_deconv_kernel, blk_b=B, blk_h=bh, width=W,
                          ci=Ci, n=N, act=act),
        out_shape=jax.ShapeDtypeStruct((B, H, 2, W, N), out_dtype),
        grid_spec=pltpu.PrefetchScalarGridSpec(
            num_scalar_prefetch=0,
            grid=(2, T),                        # (row parity, row tiles)
            in_specs=[
                # whole padded input stays resident in VMEM (index map constant)
                pl.BlockSpec((B, H + 2, W + 2, Ci), lambda ph, t: (0, 0, 0, 0)),
                # weights for the current row parity only
                pl.BlockSpec((1, 6, Ci, N), lambda ph, t: (ph, 0, 0, 0)),
                pl.BlockSpec((1, N), lambda ph, t: (0, 0)),
            ],
            out_specs=pl.BlockSpec((B, bh, 1, W, N),
                                   lambda ph, t: (0, t, ph, 0, 0)),
        ),
        compiler_params=pltpu.CompilerParams(
            dimension_semantics=("parallel", "parallel"),
            vmem_limit_bytes=_VMEM_LIMIT),
    )(hp, wpack, bias)

    # [B, H, 2, W, 2*Co] -> [B, 2H, 2W, Co] is a free row-major merge (no copy).
    return out.reshape(B, 2 * H, 2 * W, co)


# ----------------------------------------------------------------------------
# Parameters: deterministic init + one-time prepare (pack/permute/cast)
# ----------------------------------------------------------------------------
def init_params(key, in_features, latent_dim=LATENT_DIM):
    ks = jax.random.split(key, 16)

    def lin(k, fin, fout, scale=0.02):
        kw, kb = jax.random.split(k)
        return (scale * jax.random.normal(kw, (fin, fout), jnp.float32),
                scale * jax.random.normal(kb, (fout,), jnp.float32))

    p = {}
    p["enc_w"], p["enc_b"] = lin(ks[0], in_features, 512)       # encoder stand-in
    p["wmu"], p["bmu"] = lin(ks[1], 512, latent_dim)            # fc_mu
    p["wlv"], p["blv"] = lin(ks[2], 512, latent_dim)            # fc_logvar
    p["dec_fc_w"], p["dec_fc_b"] = lin(ks[3], latent_dim, 512 * 4 * 4)
    for i in range(5):
        kw, kb = jax.random.split(ks[4 + i])
        ci, cout = DEC_CHANNELS[i], DEC_CHANNELS[i + 1]
        p[f"ct{i}_w"] = 0.02 * jax.random.normal(kw, (ci, cout, 4, 4), jnp.float32)
        p[f"ct{i}_b"] = 0.02 * jax.random.normal(kb, (cout,), jnp.float32)
    return p


def _pack_deconv(w, b):
    """PyTorch ConvTranspose2d weight [Ci, Co, 4, 4] -> packed sub-pixel weights.

    Returns wpack [2, 6, Ci, 2*Co] bf16 and bias [1, 2*Co] f32.
      * first axis: output row parity ph
      * second axis: tap = tr*3 + tc, reading padded input (r+ph+tr, c+tc)
      * last axis: column parity folded into N, column index = pw*Co + co
    Kernel taps: ky = 3 - ph - 2*tr ; kx = 3 + pw - 2*tc, valid iff 0 <= tc - pw <= 1
    (column taps shared across both pw; invalid combinations are structural zeros).
    """
    ci, co = w.shape[0], w.shape[1]
    n = 2 * co
    wp = jnp.zeros((2, 6, ci, n), jnp.float32)
    for ph in (0, 1):
        for tr in (0, 1):
            for tc in (0, 1, 2):
                for pw in (0, 1):
                    if not (0 <= tc - pw <= 1):
                        continue
                    ky = 3 - ph - 2 * tr
                    kx = 3 + pw - 2 * tc
                    wp = wp.at[ph, tr * 3 + tc, :, pw * co:(pw + 1) * co].set(
                        w[:, :, ky, kx])
    bias = jnp.concatenate([b, b]).reshape(1, n).astype(jnp.float32)
    return wp.astype(jnp.bfloat16), bias


def prepare_params(p):
    """One-time pack/permute/cast of weights (hoisted out of the forward)."""
    # permute decoder-FC columns from torch Unflatten order (c, y, x) to NHWC (y, x, c)
    dfw = p["dec_fc_w"]
    L = dfw.shape[0]
    dfw = dfw.reshape(L, 512, 4, 4).transpose(0, 2, 3, 1).reshape(L, 512 * 16)
    dfb = p["dec_fc_b"].reshape(512, 4, 4).transpose(1, 2, 0).reshape(1, 512 * 16)

    prep = {
        "enc_w": p["enc_w"].astype(jnp.bfloat16),
        "enc_b": p["enc_b"].reshape(1, -1).astype(jnp.float32),
        "wmu": p["wmu"].astype(jnp.bfloat16),
        "bmu": p["bmu"].reshape(1, -1).astype(jnp.float32),
        "wlv": p["wlv"].astype(jnp.bfloat16),
        "blv": p["blv"].reshape(1, -1).astype(jnp.float32),
        "dec_fc_w": dfw.astype(jnp.bfloat16),
        "dec_fc_b": dfb.astype(jnp.float32),
    }
    for i in range(5):
        wp, bias = _pack_deconv(p[f"ct{i}_w"], p[f"ct{i}_b"])
        prep[f"ct{i}_w"] = wp
        prep[f"ct{i}_b"] = bias
    return prep


# ----------------------------------------------------------------------------
# Forward
# ----------------------------------------------------------------------------
def vae_forward(prep, x, eps):
    """x: [B, C, H, W] NCHW float32. Returns (x_reconstructed, mu, logvar)."""
    B = x.shape[0]

    # encode + fc_mu/fc_logvar + reparameterize + decoder Linear (fused kernel)
    xf = x.reshape(B, -1)
    mu, logvar, h = fused_encode_head_decfc(
        xf, prep["enc_w"], prep["enc_b"], prep["wmu"], prep["bmu"],
        prep["wlv"], prep["blv"], eps, prep["dec_fc_w"], prep["dec_fc_b"])

    # decoder: Unflatten (columns pre-permuted -> NHWC) -> 5x sub-pixel ConvTranspose2d
    h = h.reshape(B, 4, 4, 512)
    for i in range(5):
        last = i == 4
        h = conv_transpose2d(
            h, prep[f"ct{i}_w"], prep[f"ct{i}_b"], act=DEC_ACTS[i],
            out_dtype=jnp.float32 if last else jnp.bfloat16)
    return h.transpose(0, 3, 1, 2), mu, logvar                  # NCHW


# ----------------------------------------------------------------------------
if __name__ == "__main__":
    # --- numerical self-check of the sub-pixel ConvTranspose2d packing -------
    kc = jax.random.split(jax.random.PRNGKey(0), 3)
    xc = jax.random.normal(kc[0], (2, 8, 8, 8), jnp.float32)          # [B,H,W,Ci]
    wc = 0.05 * jax.random.normal(kc[1], (8, 16, 4, 4), jnp.float32)  # [Ci,Co,4,4]
    bc = 0.05 * jax.random.normal(kc[2], (16,), jnp.float32)
    wpk, bpk = _pack_deconv(wc, bc)
    got = conv_transpose2d(xc, wpk, bpk, act="relu", out_dtype=jnp.float32)
    ref = jax.lax.conv_general_dilated(
        xc, jnp.flip(wc, (2, 3)).transpose(2, 3, 0, 1),
        window_strides=(1, 1), padding=((2, 2), (2, 2)), lhs_dilation=(2, 2),
        dimension_numbers=("NHWC", "HWIO", "NHWC")) + bc
    ref = jnp.maximum(ref, 0.0)
    assert got.shape == ref.shape == (2, 16, 16, 16), got.shape
    err = float(jnp.max(jnp.abs(got - ref)))
    assert err < 3e-2, f"ConvTranspose2d packing mismatch, max abs err {err}"

    # --- end-to-end VAE forward ----------------------------------------------
    B, C, H, W = 2, 3, 32, 32
    x = jax.random.normal(jax.random.PRNGKey(0), (B, C, H, W), jnp.float32)
    params = init_params(jax.random.PRNGKey(1), in_features=C * H * W)
    prep = prepare_params(params)
    eps = jax.random.normal(jax.random.PRNGKey(2), (B, LATENT_DIM), jnp.float32)

    fwd = jax.jit(vae_forward)
    recon, mu, logvar = fwd(prep, x, eps)
    jax.block_until_ready((recon, mu, logvar))

    assert recon.shape == (B, 3, 128, 128), recon.shape
    assert mu.shape == (B, LATENT_DIM) and logvar.shape == (B, LATENT_DIM)
    assert bool(jnp.all(jnp.isfinite(recon)))
    assert bool(jnp.all(jnp.abs(recon) <= 1.0 + 1e-6))  # tanh output range

    print("KERNEL_OK")
</pallas_src>

<mosaic_0001>
module attributes {stable_mosaic.version = 11 : i64} {
  func.func @_deconv_kernel(%arg0: i32, %arg1: i32, %arg2: memref<2x10x10x8xbf16, #tpu.memory_space<vmem>>, %arg3: memref<1x6x8x32xbf16, #tpu.memory_space<vmem>>, %arg4: memref<1x32xf32, #tpu.memory_space<vmem>>, %arg5: memref<2x8x1x8x32xf32, #tpu.memory_space<vmem>>) attributes {dimension_semantics = [#tpu.dimension_semantics<parallel>, #tpu.dimension_semantics<parallel>], iteration_bounds = array<i64: 2, 1>, scalar_prefetch = 0 : i64, scratch_operands = 0 : i64, tpu.core_type = #tpu.core_type<tc>, window_params = [{pipeline_mode = #tpu.pipeline_mode<synchronous>, transform_indices = @transform_0, window_bounds = array<i64: 2, 10, 10, 8>}, {transform_indices = @transform_1, window_bounds = array<i64: 1, 6, 8, 32>}, {pipeline_mode = #tpu.pipeline_mode<synchronous>, transform_indices = @transform_2, window_bounds = array<i64: 1, 32>}, {transform_indices = @transform_3, window_bounds = array<i64: 2, 8, 1, 8, 32>}]} {
    %c8_i32 = arith.constant 8 : i32
    %0 = arith.muli %arg1, %c8_i32 : i32
    %cst = arith.constant 0.000000e+00 : f32
    %1 = vector.broadcast %cst : f32 to vector<128x32xf32>
    %2 = arith.addi %0, %arg0 : i32
    %c0_i32 = arith.constant 0 : i32
    %3 = arith.addi %2, %c0_i32 : i32
    %c0 = arith.constant 0 : index
    %4 = arith.index_cast %3 : i32 to index
    %c0_0 = arith.constant 0 : index
    %c0_1 = arith.constant 0 : index
    %5 = vector.load %arg2[%c0, %4, %c0_0, %c0_1] : memref<2x10x10x8xbf16, #tpu.memory_space<vmem>>, vector<2x8x10x8xbf16>
    %6 = vector.extract_strided_slice %5 {offsets = [0, 0, 0, 0], sizes = [2, 8, 8, 8], strides = [1, 1, 1, 1]} : vector<2x8x10x8xbf16> to vector<2x8x8x8xbf16>
    %7 = vector.shape_cast %6 : vector<2x8x8x8xbf16> to vector<128x8xbf16>
    %c0_2 = arith.constant 0 : index
    %c0_3 = arith.constant 0 : index
    %c0_4 = arith.constant 0 : index
    %c0_5 = arith.constant 0 : index
    %8 = vector.load %arg3[%c0_2, %c0_3, %c0_4, %c0_5] : memref<1x6x8x32xbf16, #tpu.memory_space<vmem>>, vector<1x1x8x32xbf16>
    %9 = vector.shape_cast %8 : vector<1x1x8x32xbf16> to vector<8x32xbf16>
    %cst_6 = arith.constant dense<0.000000e+00> : vector<128x32xf32>
    %10 = tpu.matmul %7, %9, %cst_6 {dimension_numbers = #tpu.dot_dimension_numbers<[1], [0], [0], [1], [0, 0, 1, 1], [], []>} : vector<128x8xbf16>, vector<8x32xbf16>, vector<128x32xf32> -> vector<128x32xf32>
    %11 = arith.addf %1, %10 : vector<128x32xf32>
    %12 = vector.extract_strided_slice %5 {offsets = [0, 0, 1, 0], sizes = [2, 8, 8, 8], strides = [1, 1, 1, 1]} : vector<2x8x10x8xbf16> to vector<2x8x8x8xbf16>
    %13 = vector.shape_cast %12 : vector<2x8x8x8xbf16> to vector<128x8xbf16>
    %c0_7 = arith.constant 0 : index
    %c1 = arith.constant 1 : index
    %c0_8 = arith.constant 0 : index
    %c0_9 = arith.constant 0 : index
    %14 = vector.load %arg3[%c0_7, %c1, %c0_8, %c0_9] : memref<1x6x8x32xbf16, #tpu.memory_space<vmem>>, vector<1x1x8x32xbf16>
    %15 = vector.shape_cast %14 : vector<1x1x8x32xbf16> to vector<8x32xbf16>
    %cst_10 = arith.constant dense<0.000000e+00> : vector<128x32xf32>
    %16 = tpu.matmul %13, %15, %cst_10 {dimension_numbers = #tpu.dot_dimension_numbers<[1], [0], [0], [1], [0, 0, 1, 1], [], []>} : vector<128x8xbf16>, vector<8x32xbf16>, vector<128x32xf32> -> vector<128x32xf32>
    %17 = arith.addf %11, %16 : vector<128x32xf32>
    %18 = vector.extract_strided_slice %5 {offsets = [0, 0, 2, 0], sizes = [2, 8, 8, 8], strides = [1, 1, 1, 1]} : vector<2x8x10x8xbf16> to vector<2x8x8x8xbf16>
    %19 = vector.shape_cast %18 : vector<2x8x8x8xbf16> to vector<128x8xbf16>
    %c0_11 = arith.constant 0 : index
    %c2 = arith.constant 2 : index
    %c0_12 = arith.constant 0 : index
    %c0_13 = arith.constant 0 : index
    %20 = vector.load %arg3[%c0_11, %c2, %c0_12, %c0_13] : memref<1x6x8x32xbf16, #tpu.memory_space<vmem>>, vector<1x1x8x32xbf16>
    %21 = vector.shape_cast %20 : vector<1x1x8x32xbf16> to vector<8x32xbf16>
    %cst_14 = arith.constant dense<0.000000e+00> : vector<128x32xf32>
    %22 = tpu.matmul %19, %21, %cst_14 {dimension_numbers = #tpu.dot_dimension_numbers<[1], [0], [0], [1], [0, 0, 1, 1], [], []>} : vector<128x8xbf16>, vector<8x32xbf16>, vector<128x32xf32> -> vector<128x32xf32>
    %23 = arith.addf %17, %22 : vector<128x32xf32>
    %24 = arith.addi %0, %arg0 : i32
    %c1_i32 = arith.constant 1 : i32
    %25 = arith.addi %24, %c1_i32 : i32
    %c0_15 = arith.constant 0 : index
    %26 = arith.index_cast %25 : i32 to index
    %c0_16 = arith.constant 0 : index
    %c0_17 = arith.constant 0 : index
    %27 = vector.load %arg2[%c0_15, %26, %c0_16, %c0_17] : memref<2x10x10x8xbf16, #tpu.memory_space<vmem>>, vector<2x8x10x8xbf16>
    %28 = vector.extract_strided_slice %27 {offsets = [0, 0, 0, 0], sizes = [2, 8, 8, 8], strides = [1, 1, 1, 1]} : vector<2x8x10x8xbf16> to vector<2x8x8x8xbf16>
    %29 = vector.shape_cast %28 : vector<2x8x8x8xbf16> to vector<128x8xbf16>
    %c0_18 = arith.constant 0 : index
    %c3 = arith.constant 3 : index
    %c0_19 = arith.constant 0 : index
    %c0_20 = arith.constant 0 : index
    %30 = vector.load %arg3[%c0_18, %c3, %c0_19, %c0_20] : memref<1x6x8x32xbf16, #tpu.memory_space<vmem>>, vector<1x1x8x32xbf16>
    %31 = vector.shape_cast %30 : vector<1x1x8x32xbf16> to vector<8x32xbf16>
    %cst_21 = arith.constant dense<0.000000e+00> : vector<128x32xf32>
    %32 = tpu.matmul %29, %31, %cst_21 {dimension_numbers = #tpu.dot_dimension_numbers<[1], [0], [0], [1], [0, 0, 1, 1], [], []>} : vector<128x8xbf16>, vector<8x32xbf16>, vector<128x32xf32> -> vector<128x32xf32>
    %33 = arith.addf %23, %32 : vector<128x32xf32>
    %34 = vector.extract_strided_slice %27 {offsets = [0, 0, 1, 0], sizes = [2, 8, 8, 8], strides = [1, 1, 1, 1]} : vector<2x8x10x8xbf16> to vector<2x8x8x8xbf16>
    %35 = vector.shape_cast %34 : vector<2x8x8x8xbf16> to vector<128x8xbf16>
    %c0_22 = arith.constant 0 : index
    %c4 = arith.constant 4 : index
    %c0_23 = arith.constant 0 : index
    %c0_24 = arith.constant 0 : index
    %36 = vector.load %arg3[%c0_22, %c4, %c0_23, %c0_24] : memref<1x6x8x32xbf16, #tpu.memory_space<vmem>>, vector<1x1x8x32xbf16>
    %37 = vector.shape_cast %36 : vector<1x1x8x32xbf16> to vector<8x32xbf16>
    %cst_25 = arith.constant dense<0.000000e+00> : vector<128x32xf32>
    %38 = tpu.matmul %35, %37, %cst_25 {dimension_numbers = #tpu.dot_dimension_numbers<[1], [0], [0], [1], [0, 0, 1, 1], [], []>} : vector<128x8xbf16>, vector<8x32xbf16>, vector<128x32xf32> -> vector<128x32xf32>
    %39 = arith.addf %33, %38 : vector<128x32xf32>
    %40 = vector.extract_strided_slice %27 {offsets = [0, 0, 2, 0], sizes = [2, 8, 8, 8], strides = [1, 1, 1, 1]} : vector<2x8x10x8xbf16> to vector<2x8x8x8xbf16>
    %41 = vector.shape_cast %40 : vector<2x8x8x8xbf16> to vector<128x8xbf16>
    %c0_26 = arith.constant 0 : index
    %c5 = arith.constant 5 : index
    %c0_27 = arith.constant 0 : index
    %c0_28 = arith.constant 0 : index
    %42 = vector.load %arg3[%c0_26, %c5, %c0_27, %c0_28] : memref<1x6x8x32xbf16, #tpu.memory_space<vmem>>, vector<1x1x8x32xbf16>
    %43 = vector.shape_cast %42 : vector<1x1x8x32xbf16> to vector<8x32xbf16>
    %cst_29 = arith.constant dense<0.000000e+00> : vector<128x32xf32>
    %44 = tpu.matmul %41, %43, %cst_29 {dimension_numbers = #tpu.dot_dimension_numbers<[1], [0], [0], [1], [0, 0, 1, 1], [], []>} : vector<128x8xbf16>, vector<8x32xbf16>, vector<128x32xf32> -> vector<128x32xf32>
    %45 = arith.addf %39, %44 : vector<128x32xf32>
    %c0_30 = arith.constant 0 : index
    %c0_31 = arith.constant 0 : index
    %46 = vector.load %arg4[%c0_30, %c0_31] : memref<1x32xf32, #tpu.memory_space<vmem>>, vector<1x32xf32>
    %47 = vector.broadcast %46 : vector<1x32xf32> to vector<128x32xf32>
    %48 = arith.addf %45, %47 : vector<128x32xf32>
    %cst_32 = arith.constant 0.000000e+00 : f32
    %49 = vector.broadcast %cst_32 : f32 to vector<128x32xf32>
    %50 = arith.maximumf %48, %49 : vector<128x32xf32>
    %51 = vector.shape_cast %50 : vector<128x32xf32> to vector<2x8x1x8x32xf32>
    %c0_33 = arith.constant 0 : index
    %c0_34 = arith.constant 0 : index
    %c0_35 = arith.constant 0 : index
    %c0_36 = arith.constant 0 : index
    %c0_37 = arith.constant 0 : index
    %52 = vector.load %arg5[%c0_33, %c0_34, %c0_35, %c0_36, %c0_37] : memref<2x8x1x8x32xf32, #tpu.memory_space<vmem>>, vector<2x8x1x8x32xf32>
    tpu.vector_store %arg5[%c0_33, %c0_34, %c0_35, %c0_36, %c0_37], %51 {strides = array<i32>} : memref<2x8x1x8x32xf32, #tpu.memory_space<vmem>>, vector<2x8x1x8x32xf32>,
    return
  }
  func.func @transform_0(%arg0: i32, %arg1: i32) -> (i32, i32, i32, i32) {
    %c0_i32 = arith.constant 0 : i32
    %c0_i32_0 = arith.constant 0 : i32
    %c0_i32_1 = arith.constant 0 : i32
    %c0_i32_2 = arith.constant 0 : i32
    %c0_i32_3 = arith.constant 0 : i32
    return %c0_i32, %c0_i32_0, %c0_i32_1, %c0_i32_2 : i32, i32, i32, i32
  }
  func.func @transform_1(%arg0: i32, %arg1: i32) -> (i32, i32, i32, i32) {
    %c0_i32 = arith.constant 0 : i32
    %c0_i32_0 = arith.constant 0 : i32
    %c0_i32_1 = arith.constant 0 : i32
    %c0_i32_2 = arith.constant 0 : i32
    return %arg0, %c0_i32, %c0_i32_0, %c0_i32_1 : i32, i32, i32, i32
  }
  func.func @transform_2(%arg0: i32, %arg1: i32) -> (i32, i32) {
    %c0_i32 = arith.constant 0 : i32
    %c0_i32_0 = arith.constant 0 : i32
    %c0_i32_1 = arith.constant 0 : i32
    return %c0_i32, %c0_i32_0 : i32, i32
  }
  func.func @transform_3(%arg0: i32, %arg1: i32) -> (i32, i32, i32, i32, i32) {
    %c0_i32 = arith.constant 0 : i32
    %c0_i32_0 = arith.constant 0 : i32
    %c0_i32_1 = arith.constant 0 : i32
    %c0_i32_2 = arith.constant 0 : i32
    return %c0_i32, %arg1, %arg0, %c0_i32_0, %c0_i32_1 : i32, i32, i32, i32, i32
  }
}

</mosaic_0001>

<llo_original>
// kernel: tpu_custom_call.1
$region0: #{tpu_custom_call.1}
  #allocation0 [shape = 'u32[]', space=smem, size = 0x4, offset = 0x4, fixed_abs, tag = 'smem constant byte address 0x4 - core index']
  #allocation1 [shape = 'u32[144,128]{1,0:T(1,128)}', space=vmem, size = 0x12000, scoped, tag = 'internal scratch']
  %s0 = inlined_call_operand.vmem [shape: bf16[2,10,10,8], index: 0, kind: input, shape index: {}]
  %s1 = inlined_call_operand.vmem [shape: bf16[2,6,8,32], index: 1, kind: input, shape index: {}]
  %s2 = inlined_call_operand.vmem [shape: f32[1,32], index: 2, kind: input, shape index: {}]
  %s3 = inlined_call_operand.hbm [shape: f32[2,8,2,8,32], index: 3, kind: output, shape index: {}]
  %s4 = sld [smem:[#allocation0]]
  $region45: #{tpu_custom_call.1} parent=0
    _
  %s6 = ssub.s32 1, %s4
  %s7 = scalar_select 0, %s6, %s4
  $region1: #{tpu_custom_call.1} parent=0
    #allocation2 [shape = 'u8[131072]{0}', space=vmem, size = 0x20000, scoped, tag = 'output window, operand 0']
    #allocation3 [shape = 's32[2]{0}', space=sflag, size = 0x8, scoped, tag = 'scoped memory for tpu_custom_call.1']
    %8 = vsyncpa [#allocation3], 0
    %s9 = scalar_lea.sflag [#allocation3], 1
    %10 = vsyncpa %s9, 0
    loop: start=0, step=1, limit=4
    $region2: #{tpu_custom_call.1} parent=1 // loop_pre_header
      _
    $region3: #{tpu_custom_call.1} parent=1 // loop_header
      %s12 = sphi 0, %s16
      %p13 = scmp.ge.s32.totalorder %s12, 4
      %s19 = sphi 0, %s31
      %s20 = sphi 0, %s27
      %s21 = sphi 0, %s19
      %s22 = sphi 0, %s20
      %s23 = sphi 0, %s21
      %s24 = sphi 0, %s22
      %s32 = sphi 0, %s32
      %s34 = sphi 0, %s32
      %s35 = sphi 0, %s34
      %s49 = sphi 0, %s35
      %s55 = sphi 0, %s57
      %s58 = sphi 0, %s55
      %s59 = sphi 0, %s58
      %s75 = sphi 0, %s59
      %s79 = sphi 0, %s79
      %s81 = sphi 0, %s79
      %s82 = sphi 0, %s81
      %s96 = sphi 0, %s82
      %s104 = sphi 0, %s106
      %s107 = sphi 0, %s104
      %s108 = sphi 0, %s107
      %s124 = sphi 0, %s108
    $region4: #{tpu_custom_call.1} parent=1 // loop_header_branch
      %15 = sbr.rel (%p13) target = $region8
    $region5: #{tpu_custom_call.1} parent=1 // loop_body
      %s17 = ssub.s32 %s12, 1
      %s18 = ssub.s32 %s12, 2
      %s25 = sadd.s32 1, %s20
      %p26 = scmp.ge.s32.totalorder %s25, 1
      %s27 = scalar_select %p26, 0, %s25
      %s28 = sadd.s32 1, %s19
      %s29 = scalar_select %p26, %s28, %s19
      %p30 = scmp.ge.s32.totalorder %s29, 2
      %s31 = scalar_select %p30, 0, %s29
      %s33 = sadd.s32 %s32, 1
      %p36 = scmp.eq.s32.totalorder %s12, 1
      %p37 = scmp.ne.s32.totalorder %s32, %s34
      %p38 = scmp.eq.s32.totalorder %s12, 0
      %p39 = por %p37, %p38
      %p40 = scmp.ne.s32.totalorder %s32, %s34
      %p41 = scmp.eq.s32.totalorder %s17, 1
      %p42 = por %p40, %p41
      %p43 = scmp.ne.s32.totalorder %s34, %s35
      %p44 = scmp.eq.s32.totalorder %s17, 0
      %p45 = por %p43, %p44
      %p46 = scmp.ne.s32.totalorder %s34, %s35
      %p47 = scmp.eq.s32.totalorder %s18, 1
      %p48 = por %p46, %p47
      %p50 = scmp.ne.s32.totalorder %s35, %s49
      %p51 = scmp.eq.s32.totalorder %s18, 0
      %p52 = por %p50, %p51
      %s53 = ssub.s32 %s19, %s31
      %p54 = scmp.eq.s32.totalorder %s53, 0
      %s56 = sadd.s32 %s55, 1
      %s57 = scalar_select %p54, %s55, %s56
      %p60 = pneg %p54
      %p61 = scmp.eq.s32.totalorder %s12, 1
      %p62 = por %p60, %p61
      %p63 = scmp.ne.s32.totalorder %s55, %s58
      %p64 = scmp.eq.s32.totalorder %s12, 0
      %p65 = por %p63, %p64
      %p66 = scmp.ne.s32.totalorder %s55, %s58
      %p67 = scmp.eq.s32.totalorder %s17, 1
      %p68 = por %p66, %p67
      %p69 = scmp.ne.s32.totalorder %s58, %s59
      %p70 = scmp.eq.s32.totalorder %s17, 0
      %p71 = por %p69, %p70
      %p72 = scmp.ne.s32.totalorder %s58, %s59
      %p73 = scmp.eq.s32.totalorder %s18, 1
      %p74 = por %p72, %p73
      %p76 = scmp.ne.s32.totalorder %s59, %s75
      %p77 = scmp.eq.s32.totalorder %s18, 0
      %p78 = por %p76, %p77
      %s80 = sadd.s32 %s79, 1
      %p83 = scmp.eq.s32.totalorder %s12, 1
      %p84 = scmp.ne.s32.totalorder %s79, %s81
      %p85 = scmp.eq.s32.totalorder %s12, 0
      %p86 = por %p84, %p85
      %p87 = scmp.ne.s32.totalorder %s79, %s81
      %p88 = scmp.eq.s32.totalorder %s17, 1
      %p89 = por %p87, %p88
      %p90 = scmp.ne.s32.totalorder %s81, %s82
      %p91 = scmp.eq.s32.totalorder %s17, 0
      %p92 = por %p90, %p91
      %p93 = scmp.ne.s32.totalorder %s81, %s82
      %p94 = scmp.eq.s32.totalorder %s18, 1
      %p95 = por %p93, %p94
      %p97 = scmp.ne.s32.totalorder %s82, %s96
      %p98 = scmp.eq.s32.totalorder %s18, 0
      %p99 = por %p97, %p98
      %s100 = ssub.s32 %s20, %s27
      %s101 = ssub.s32 %s19, %s31
      %s102 = sor.u32 %s100, %s101
      %p103 = scmp.eq.s32.totalorder %s102, 0
      %s105 = sadd.s32 %s104, 1
      %s106 = scalar_select %p103, %s104, %s105
      %p109 = pneg %p103
      %p110 = scmp.eq.s32.totalorder %s12, 1
      %p111 = por %p109, %p110
      %p112 = scmp.ne.s32.totalorder %s104, %s107
      %p113 = scmp.eq.s32.totalorder %s12, 0
      %p114 = por %p112, %p113
      %p115 = scmp.ne.s32.totalorder %s104, %s107
      %p116 = scmp.eq.s32.totalorder %s17, 1
      %p117 = por %p115, %p116
      %p118 = scmp.ne.s32.totalorder %s107, %s108
      %p119 = scmp.eq.s32.totalorder %s17, 0
      %p120 = por %p118, %p119
      %p121 = scmp.ne.s32.totalorder %s107, %s108
      %p122 = scmp.eq.s32.totalorder %s18, 1
      %p123 = por %p121, %p122
      %p125 = scmp.ne.s32.totalorder %s108, %s124
      %p126 = scmp.eq.s32.totalorder %s18, 0
      %p127 = por %p125, %p126
      %p128 = scmp.le.s32.totalorder 1, %s12
      %p129 = scmp.lt.s32.totalorder %s12, 3
      %p130 = pnand %p128, %p129
      %p131 = pneg %p130
      // Predicated region
      $region9: #{tpu_custom_call.1} parent=5 // pred_check
        _
      $region10: #{tpu_custom_call.1} parent=5 // pred_check_branch
        %133 = sbr.rel (%p130) target = $region12
      $region11: #{tpu_custom_call.1} parent=5 // pred_region
        %s134 = ssub.s32 %s12, 1
        // Predicated region
        $region13: #{tpu_custom_call.1} parent=11 // pred_check
          %p135 = pneg %p45
        $region14: #{tpu_custom_call.1} parent=11 // pred_check_branch
          %137 = sbr.rel (%p135) target = $region16
        $region15: #{tpu_custom_call.1} parent=11 // pred_region
          _
        $region16: #{tpu_custom_call.1} parent=11 // pred_fallthru
          _
        // Predicated region
        $region17: #{tpu_custom_call.1} parent=11 // pred_check
          %p138 = pneg %p92
        $region18: #{tpu_custom_call.1} parent=11 // pred_check_branch
          %140 = sbr.rel (%p138) target = $region20
        $region19: #{tpu_custom_call.1} parent=11 // pred_region
          _
        $region20: #{tpu_custom_call.1} parent=11 // pred_fallthru
          _
      $region12: #{tpu_custom_call.1} parent=5 // pred_fallthru
        _
      %p141 = scmp.lt.s32.totalorder %s12, 2
      // Predicated region
      $region21: #{tpu_custom_call.1} parent=5 // pred_check
        %p142 = pneg %p141
      $region22: #{tpu_custom_call.1} parent=5 // pred_check_branch
        %144 = sbr.rel (%p142) target = $region24
      $region23: #{tpu_custom_call.1} parent=5 // pred_region
        // Predicated region
        $region25: #{tpu_custom_call.1} parent=23 // pred_check
          %p145 = pneg %p65
        $region26: #{tpu_custom_call.1} parent=23 // pred_check_branch
          %147 = sbr.rel (%p145) target = $region28
        $region27: #{tpu_custom_call.1} parent=23 // pred_region
          %p148 = scmp.lt.s32.totalorder %s19, 1
          %s149 = scalar_select %p148, %s19, 1
          %s150 = smul.addr %s149, 6
          %s151 = smul.addr %s150, 4
          %s152 = scalar_lea.vmem %s1, %s151
        $region28: #{tpu_custom_call.1} parent=23 // pred_fallthru
          _
      $region24: #{tpu_custom_call.1} parent=5 // pred_fallthru
        _
      %p153 = scmp.le.s32.totalorder 1, %s12
      %p154 = scmp.lt.s32.totalorder %s12, 3
      %p155 = pnand %p153, %p154
      %p156 = pneg %p155
      // Predicated region
      $region29: #{tpu_custom_call.1} parent=5 // pred_check
        _
      $region30: #{tpu_custom_call.1} parent=5 // pred_check_branch
        %158 = sbr.rel (%p155) target = $region32
      $region31: #{tpu_custom_call.1} parent=5 // pred_region
        %s159 = ssub.s32 %s12, 1
        %p160 = pneg %p45
        %p161 = pneg %p42
        %p162 = scmp.lt.s32.totalorder %s21, 1
        %s163 = scalar_select %p162, %s21, 1
        %s164 = smul.addr %s163, 6
        %s165 = smul.addr %s164, 4
        %s166 = scalar_lea.vmem %s1, %s165
        %p167 = pneg %p71
        %p168 = pneg %p68
        %p169 = pneg %p92
        %p170 = pneg %p89
        %p171 = pneg %p120
        %p172 = pneg %p117
        %s173 = sand.u32 %s107, 1
        %s174 = scalar_lea.sflag [#allocation3], %s173
        %s175 = sand.u32 %s107, 1
        %s176 = smul.addr %s175, 128
        %s177 = scalar_lea.vmem [#allocation2], %s176
        %p178 = scmp.lt.s32.totalorder %s21, 1
        %s179 = scalar_select %p178, %s21, 1
        %s180 = smul.addr %s179, 6
        %s181 = smul.addr %s180, 4
        %s182 = scalar_lea.vmem %s1, %s181
        %s183 = smul.u32 8, %s22
        %s185 = smul.u32 %s22, 8
        %s186 = sadd.s32 %s185, %s21
        %s187 = smul.u32 %s186, 2
        %s188 = smul.addr %s187, 4
        %s189 = scalar_lea.vmem %s0, %s188
        %v190 = vld [vmem:[%s189] sm:$0xf]
        %v191 = vld [vmem:[%s189 + $0x4] sm:$0x1]
        %v192 = vld [vmem:[%s189 + $0x8] sm:$0xf]
        %v193 = vld [vmem:[%s189 + $0xc] sm:$0x1]
        %v194 = vld [vmem:[%s189 + $0x10] sm:$0xf]
        %v195 = vld [vmem:[%s189 + $0x14] sm:$0x1]
        %v196 = vld [vmem:[%s189 + $0x18] sm:$0xf]
        %v197 = vld [vmem:[%s189 + $0x1c] sm:$0x1]
        %v198 = vld [vmem:[%s189 + $0x20] sm:$0xf]
        %v199 = vld [vmem:[%s189 + $0x24] sm:$0x1]
        %v200 = vld [vmem:[%s189 + $0x28] sm:$0xf]
        %v201 = vld [vmem:[%s189 + $0x2c] sm:$0x1]
        %v202 = vld [vmem:[%s189 + $0x30] sm:$0xf]
        %v203 = vld [vmem:[%s189 + $0x34] sm:$0x1]
        %v204 = vld [vmem:[%s189 + $0x38] sm:$0xf]
        %v205 = vld [vmem:[%s189 + $0x3c] sm:$0x1]
        %v206 = vld [vmem:[%s189 + $0x50] sm:$0xf]
        %v207 = vld [vmem:[%s189 + $0x54] sm:$0x1]
        %v208 = vld [vmem:[%s189 + $0x58] sm:$0xf]
        %v209 = vld [vmem:[%s189 + $0x5c] sm:$0x1]
        %v210 = vld [vmem:[%s189 + $0x60] sm:$0xf]
        %v211 = vld [vmem:[%s189 + $0x64] sm:$0x1]
        %v212 = vld [vmem:[%s189 + $0x68] sm:$0xf]
        %v213 = vld [vmem:[%s189 + $0x6c] sm:$0x1]
        %v214 = vld [vmem:[%s189 + $0x70] sm:$0xf]
        %v215 = vld [vmem:[%s189 + $0x74] sm:$0x1]
        %v216 = vld [vmem:[%s189 + $0x78] sm:$0xf]
        %v217 = vld [vmem:[%s189 + $0x7c] sm:$0x1]
        %v218 = vld [vmem:[%s189 + $0x80] sm:$0xf]
        %v219 = vld [vmem:[%s189 + $0x84] sm:$0x1]
        %v220 = vld [vmem:[%s189 + $0x88] sm:$0xf]
        %v221 = vld [vmem:[%s189 + $0x8c] sm:$0x1]
        %v222 = vld [vmem:[%s182] sm:$0xf]
        %vm223 = vsmask.f32 3328
        %vm224 = vsmask.f32 7440
        %vm225 = vmor %vm223, %vm224
        %v227 = vshrl.u32 %v190, 16
        %v229 = vrot.slane %v227, 4
        %v230 = vshll.u32 %v190, 16
        %v232 = vrot.slane %v230, 5
        %v233 = vor.u32 %v229, %v232
        %v234 = vrot.slane %v233, 4
        %v236 = vshll.u32 %v191, 16
        %v238 = vrot.slane %v236, 5
        %v239 = vsel %vm225, %v234, %v238
        %v241 = vshrl.u32 %v192, 16
        %v243 = vrot.slane %v241, 4
        %v244 = vshll.u32 %v192, 16
        %v246 = vrot.slane %v244, 5
        %v247 = vor.u32 %v243, %v246
        %v248 = vrot.slane %v247, 4
        %v250 = vshll.u32 %v193, 16
        %v252 = vrot.slane %v250, 5
        %v253 = vsel %vm225, %v248, %v252
        %v255 = vshrl.u32 %v194, 16
        %v257 = vrot.slane %v255, 4
        %v258 = vshll.u32 %v194, 16
        %v260 = vrot.slane %v258, 5
        %v261 = vor.u32 %v257, %v260
        %v262 = vrot.slane %v261, 4
        %v264 = vshll.u32 %v195, 16
        %v266 = vrot.slane %v264, 5
        %v267 = vsel %vm225, %v262, %v266
        %v269 = vshrl.u32 %v196, 16
        %v271 = vrot.slane %v269, 4
        %v272 = vshll.u32 %v196, 16
        %v274 = vrot.slane %v272, 5
        %v275 = vor.u32 %v271, %v274
        %v276 = vrot.slane %v275, 4
        %v278 = vshll.u32 %v197, 16
        %v280 = vrot.slane %v278, 5
        %v281 = vsel %vm225, %v276, %v280
        %v283 = vshrl.u32 %v198, 16
        %v285 = vrot.slane %v283, 4
        %v286 = vshll.u32 %v198, 16
        %v288 = vrot.slane %v286, 5
        %v289 = vor.u32 %v285, %v288
        %v290 = vrot.slane %v289, 4
        %v292 = vshll.u32 %v199, 16
        %v294 = vrot.slane %v292, 5
        %v295 = vsel %vm225, %v290, %v294
        %v297 = vshrl.u32 %v200, 16
        %v299 = vrot.slane %v297, 4
        %v300 = vshll.u32 %v200, 16
        %v302 = vrot.slane %v300, 5
        %v303 = vor.u32 %v299, %v302
        %v304 = vrot.slane %v303, 4
        %v306 = vshll.u32 %v201, 16
        %v308 = vrot.slane %v306, 5
        %v309 = vsel %vm225, %v304, %v308
        %v311 = vshrl.u32 %v202, 16
        %v313 = vrot.slane %v311, 4
        %v314 = vshll.u32 %v202, 16
        %v316 = vrot.slane %v314, 5
        %v317 = vor.u32 %v313, %v316
        %v318 = vrot.slane %v317, 4
        %v320 = vshll.u32 %v203, 16
        %v322 = vrot.slane %v320, 5
        %v323 = vsel %vm225, %v318, %v322
        %v325 = vshrl.u32 %v204, 16
        %v327 = vrot.slane %v325, 4
        %v328 = vshll.u32 %v204, 16
        %v330 = vrot.slane %v328, 5
        %v331 = vor.u32 %v327, %v330
        %v332 = vrot.slane %v331, 4
        %v334 = vshll.u32 %v205, 16
        %v336 = vrot.slane %v334, 5
        %v337 = vsel %vm225, %v332, %v336
        %v339 = vshrl.u32 %v206, 16
        %v341 = vrot.slane %v339, 4
        %v342 = vshll.u32 %v206, 16
        %v344 = vrot.slane %v342, 5
        %v345 = vor.u32 %v341, %v344
        %v346 = vrot.slane %v345, 4
        %v348 = vshll.u32 %v207, 16
        %v350 = vrot.slane %v348, 5
        %v351 = vsel %vm225, %v346, %v350
        %v353 = vshrl.u32 %v208, 16
        %v355 = vrot.slane %v353, 4
        %v356 = vshll.u32 %v208, 16
        %v358 = vrot.slane %v356, 5
        %v359 = vor.u32 %v355, %v358
        %v360 = vrot.slane %v359, 4
        %v362 = vshll.u32 %v209, 16
        %v364 = vrot.slane %v362, 5
        %v365 = vsel %vm225, %v360, %v364
        %v367 = vshrl.u32 %v210, 16
        %v369 = vrot.slane %v367, 4
        %v370 = vshll.u32 %v210, 16
        %v372 = vrot.slane %v370, 5
        %v373 = vor.u32 %v369, %v372
        %v374 = vrot.slane %v373, 4
        %v376 = vshll.u32 %v211, 16
        %v378 = vrot.slane %v376, 5
        %v379 = vsel %vm225, %v374, %v378
        %v381 = vshrl.u32 %v212, 16
        %v383 = vrot.slane %v381, 4
        %v384 = vshll.u32 %v212, 16
        %v386 = vrot.slane %v384, 5
        %v387 = vor.u32 %v383, %v386
        %v388 = vrot.slane %v387, 4
        %v390 = vshll.u32 %v213, 16
        %v392 = vrot.slane %v390, 5
        %v393 = vsel %vm225, %v388, %v392
        %v395 = vshrl.u32 %v214, 16
        %v397 = vrot.slane %v395, 4
        %v398 = vshll.u32 %v214, 16
        %v400 = vrot.slane %v398, 5
        %v401 = vor.u32 %v397, %v400
        %v402 = vrot.slane %v401, 4
        %v404 = vshll.u32 %v215, 16
        %v406 = vrot.slane %v404, 5
        %v407 = vsel %vm225, %v402, %v406
        %v409 = vshrl.u32 %v216, 16
        %v411 = vrot.slane %v409, 4
        %v412 = vshll.u32 %v216, 16
        %v414 = vrot.slane %v412, 5
        %v415 = vor.u32 %v411, %v414
        %v416 = vrot.slane %v415, 4
        %v418 = vshll.u32 %v217, 16
        %v420 = vrot.slane %v418, 5
        %v421 = vsel %vm225, %v416, %v420
        %v423 = vshrl.u32 %v218, 16
        %v425 = vrot.slane %v423, 4
        %v426 = vshll.u32 %v218, 16
        %v428 = vrot.slane %v426, 5
        %v429 = vor.u32 %v425, %v428
        %v430 = vrot.slane %v429, 4
        %v432 = vshll.u32 %v219, 16
        %v434 = vrot.slane %v432, 5
        %v435 = vsel %vm225, %v430, %v434
        %v437 = vshrl.u32 %v220, 16
        %v439 = vrot.slane %v437, 4
        %v440 = vshll.u32 %v220, 16
        %v442 = vrot.slane %v440, 5
        %v443 = vor.u32 %v439, %v442
        %v444 = vrot.slane %v443, 4
        %v446 = vshll.u32 %v221, 16
        %v448 = vrot.slane %v446, 5
        %v449 = vsel %vm225, %v444, %v448
        %s450 = scalar_lea.vmem %s182, 4
        %v451 = vld [vmem:[%s450] sm:$0xf]
        %v452 = vunpack.c.l.b16 %v239
        %v453 = vunpack.c.l.b16 %v253
        %v454 = vunpack.c.l.b16 %v267
        %v455 = vunpack.c.l.b16 %v281
        %v456 = vunpack.c.l.b16 %v295
        %v457 = vunpack.c.l.b16 %v309
        %v458 = vunpack.c.l.b16 %v323
        %v459 = vunpack.c.l.b16 %v337
        %v460 = vunpack.c.l.b16 %v351
        %v461 = vunpack.c.l.b16 %v365
        %v462 = vunpack.c.l.b16 %v379
        %v463 = vunpack.c.l.b16 %v393
        %v464 = vunpack.c.l.b16 %v407
        %v465 = vunpack.c.l.b16 %v421
        %v466 = vunpack.c.l.b16 %v435
        %v467 = vunpack.c.l.b16 %v449
        %v468 = vpack.c.b16 %v453, %v452
        %v469 = vpack.c.b16 %v455, %v454
        %v470 = vpack.c.b16 %v457, %v456
        %v471 = vpack.c.b16 %v459, %v458
        %v472 = vpack.c.b16 %v461, %v460
        %v473 = vpack.c.b16 %v463, %v462
        %v474 = vpack.c.b16 %v465, %v464
        %v475 = vpack.c.b16 %v467, %v466
        %vm476 = vcmask 64512
        %v478 = vsel %vm476, %v468, 0
        %v481 = vsel %vm476, %v469, 0
        %v484 = vsel %vm476, %v470, 0
        %v487 = vsel %vm476, %v471, 0
        %v490 = vsel %vm476, %v472, 0
        %v493 = vsel %vm476, %v473, 0
        %v496 = vsel %vm476, %v474, 0
        %v499 = vsel %vm476, %v475, 0
        %vm501 = vcmask 1043456
        %v503 = vsel %vm501, %v451, 0
        %505 = vmatprep.subr.bf16.mxu0 0
        %506 = vmatpush1.bf16.msra.mxu0 %v503
        %507 = vmatprep.subr.bf16.mxu0 0
        %508 = vmatpush1.bf16.msra.mxu0 0
        %509 = vmatprep.subr.bf16.mxu0 0
        %510 = vmatpush1.bf16.msra.mxu0 0
        %511 = vmatprep.subr.bf16.mxu0 0
        %512 = vmatpush1.bf16.msra.mxu0 0
        %513 = vmatprep.subr.bf16.mxu0 0
        %514 = vmatpush1.bf16.msra.mxu0 0
        %515 = vmatprep.subr.bf16.mxu0 0
        %516 = vmatpush1.bf16.msra.mxu0 0
        %517 = vmatprep.subr.bf16.mxu0 0
        %518 = vmatpush1.bf16.msra.mxu0 0
        %519 = vmatprep.subr.bf16.mxu0 0
        %520 = vmatpush1.bf16.msra.mxu0 0
        %521 = vmatprep.subr.bf16.mxu0 0
        %522 = vmatpush1.bf16.msra.mxu0 0
        %523 = vmatprep.subr.bf16.mxu0 0
        %524 = vmatpush1.bf16.msra.mxu0 0
        %525 = vmatprep.subr.bf16.mxu0 0
        %526 = vmatpush1.bf16.msra.mxu0 0
        %527 = vmatprep.subr.bf16.mxu0 0
        %528 = vmatpush1.bf16.msra.mxu0 0
        %529 = vmatprep.subr.bf16.mxu0 0
        %530 = vmatpush1.bf16.msra.mxu0 0
        %531 = vmatprep.subr.bf16.mxu0 0
        %532 = vmatpush1.bf16.msra.mxu0 0
        %533 = vmatprep.subr.bf16.mxu0 0
        %534 = vmatpush1.bf16.msra.mxu0 0
        %535 = vmatprep.subr.bf16.mxu0 0
        %536 = vmatpush1.bf16.msra.mxu0 0
        %537 = vmatprep.mubr.bf16.mxu0 0
        %538 = vmatmul.mubr.bf16.gmra.mrb[0].mxu0 %v478
        %v539 = vpop.f32.mrb[0].mxu0
        %v540 = vadd.f32 0.0, %v539
        %v541 = vpop.f32.mrb[0].mxu0
        %v542 = vpop.f32.mrb[0].mxu0
        %v543 = vadd.f32 0.0, %v542
        %v544 = vpop.f32.mrb[0].mxu0
        %545 = vmatprep.mubr.bf16.mxu0 0
        %546 = vmatmul.mubr.bf16.gmra.mrb[0].mxu0 %v481
        %v547 = vpop.f32.mrb[0].mxu0
        %v548 = vadd.f32 0.0, %v547
        %v549 = vpop.f32.mrb[0].mxu0
        %v550 = vpop.f32.mrb[0].mxu0
        %v551 = vadd.f32 0.0, %v550
        %v552 = vpop.f32.mrb[0].mxu0
        %553 = vmatprep.mubr.bf16.mxu0 0
        %554 = vmatmul.mubr.bf16.gmra.mrb[0].mxu0 %v484
        %v555 = vpop.f32.mrb[0].mxu0
        %v556 = vadd.f32 0.0, %v555
        %v557 = vpop.f32.mrb[0].mxu0
        %v558 = vpop.f32.mrb[0].mxu0
        %v559 = vadd.f32 0.0, %v558
        %v560 = vpop.f32.mrb[0].mxu0
        %561 = vmatprep.mubr.bf16.mxu0 0
        %562 = vmatmul.mubr.bf16.gmra.mrb[0].mxu0 %v487
        %v563 = vpop.f32.mrb[0].mxu0
        %v564 = vadd.f32 0.0, %v563
        %v565 = vpop.f32.mrb[0].mxu0
        %v566 = vpop.f32.mrb[0].mxu0
        %v567 = vadd.f32 0.0, %v566
        %v568 = vpop.f32.mrb[0].mxu0
        %569 = vmatprep.mubr.bf16.mxu0 0
        %570 = vmatmul.mubr.bf16.gmra.mrb[0].mxu0 %v490
        %v571 = vpop.f32.mrb[0].mxu0
        %v572 = vadd.f32 0.0, %v571
        %v573 = vpop.f32.mrb[0].mxu0
        %v574 = vpop.f32.mrb[0].mxu0
        %v575 = vadd.f32 0.0, %v574
        %v576 = vpop.f32.mrb[0].mxu0
        %577 = vmatprep.mubr.bf16.mxu0 0
        %578 = vmatmul.mubr.bf16.gmra.mrb[0].mxu0 %v493
        %v579 = vpop.f32.mrb[0].mxu0
        %v580 = vadd.f32 0.0, %v579
        %v581 = vpop.f32.mrb[0].mxu0
        %v582 = vpop.f32.mrb[0].mxu0
        %v583 = vadd.f32 0.0, %v582
        %v584 = vpop.f32.mrb[0].mxu0
        %585 = vmatprep.mubr.bf16.mxu0 0
        %586 = vmatmul.mubr.bf16.gmra.mrb[0].mxu0 %v496
        %v587 = vpop.f32.mrb[0].mxu0
        %v588 = vadd.f32 0.0, %v587
        %v589 = vpop.f32.mrb[0].mxu0
        %v590 = vpop.f32.mrb[0].mxu0
        %v591 = vadd.f32 0.0, %v590
        %v592 = vpop.f32.mrb[0].mxu0
        %593 = vmatprep.mubr.bf16.mxu0 0
        %594 = vmatmul.mubr.bf16.gmra.mrb[0].mxu0 %v499
        %v595 = vpop.f32.mrb[0].mxu0
        %v596 = vadd.f32 0.0, %v595
        %v597 = vpop.f32.mrb[0].mxu0
        %v598 = vpop.f32.mrb[0].mxu0
        %v599 = vadd.f32 0.0, %v598
        %v600 = vpop.f32.mrb[0].mxu0
        %601 = vdwg.mxu0
        %v618 = vunpack.c.l.b16 %v190
        %v619 = vunpack.c.l.b16 %v192
        %v620 = vunpack.c.l.b16 %v194
        %v621 = vunpack.c.l.b16 %v196
        %v622 = vunpack.c.l.b16 %v198
        %v623 = vunpack.c.l.b16 %v200
        %v624 = vunpack.c.l.b16 %v202
        %v625 = vunpack.c.l.b16 %v204
        %v626 = vunpack.c.l.b16 %v206
        %v627 = vunpack.c.l.b16 %v208
        %v628 = vunpack.c.l.b16 %v210
        %v629 = vunpack.c.l.b16 %v212
        %v630 = vunpack.c.l.b16 %v214
        %v631 = vunpack.c.l.b16 %v216
        %v632 = vunpack.c.l.b16 %v218
        %v633 = vunpack.c.l.b16 %v220
        %v634 = vpack.c.b16 %v619, %v618
        %v635 = vpack.c.b16 %v621, %v620
        %v636 = vpack.c.b16 %v623, %v622
        %v637 = vpack.c.b16 %v625, %v624
        %v638 = vpack.c.b16 %v627, %v626
        %v639 = vpack.c.b16 %v629, %v628
        %v640 = vpack.c.b16 %v631, %v630
        %v641 = vpack.c.b16 %v633, %v632
        %v643 = vsel %vm476, %v634, 0
        %v646 = vsel %vm476, %v635, 0
        %v649 = vsel %vm476, %v636, 0
        %v652 = vsel %vm476, %v637, 0
        %v655 = vsel %vm476, %v638, 0
        %v658 = vsel %vm476, %v639, 0
        %v661 = vsel %vm476, %v640, 0
        %v664 = vsel %vm476, %v641, 0
        %v667 = vsel %vm501, %v222, 0
        %669 = vmatprep.subr.bf16.mxu0 0
        %670 = vmatpush1.bf16.msra.mxu0 %v667
        %671 = vmatprep.subr.bf16.mxu0 0
        %672 = vmatpush1.bf16.msra.mxu0 0
        %673 = vmatprep.subr.bf16.mxu0 0
        %674 = vmatpush1.bf16.msra.mxu0 0
        %675 = vmatprep.subr.bf16.mxu0 0
        %676 = vmatpush1.bf16.msra.mxu0 0
        %677 = vmatprep.subr.bf16.mxu0 0
        %678 = vmatpush1.bf16.msra.mxu0 0
        %679 = vmatprep.subr.bf16.mxu0 0
        %680 = vmatpush1.bf16.msra.mxu0 0
        %681 = vmatprep.subr.bf16.mxu0 0
        %682 = vmatpush1.bf16.msra.mxu0 0
        %683 = vmatprep.subr.bf16.mxu0 0
        %684 = vmatpush1.bf16.msra.mxu0 0
        %685 = vmatprep.subr.bf16.mxu0 0
        %686 = vmatpush1.bf16.msra.mxu0 0
        %687 = vmatprep.subr.bf16.mxu0 0
        %688 = vmatpush1.bf16.msra.mxu0 0
        %689 = vmatprep.subr.bf16.mxu0 0
        %690 = vmatpush1.bf16.msra.mxu0 0
        %691 = vmatprep.subr.bf16.mxu0 0
        %692 = vmatpush1.bf16.msra.mxu0 0
        %693 = vmatprep.subr.bf16.mxu0 0
        %694 = vmatpush1.bf16.msra.mxu0 0
        %695 = vmatprep.subr.bf16.mxu0 0
        %696 = vmatpush1.bf16.msra.mxu0 0
        %697 = vmatprep.subr.bf16.mxu0 0
        %698 = vmatpush1.bf16.msra.mxu0 0
        %699 = vmatprep.subr.bf16.mxu0 0
        %700 = vmatpush1.bf16.msra.mxu0 0
        %701 = vmatprep.mubr.bf16.mxu0 0
        %702 = vmatmul.mubr.bf16.gmra.mrb[0].mxu0 %v643
        %v703 = vpop.f32.mrb[0].mxu0
        %v704 = vadd.f32 %v540, %v703
        %v705 = vpop.f32.mrb[0].mxu0
        %v706 = vpop.f32.mrb[0].mxu0
        %v707 = vadd.f32 %v543, %v706
        %v708 = vpop.f32.mrb[0].mxu0
        %709 = vmatprep.mubr.bf16.mxu0 0
        %710 = vmatmul.mubr.bf16.gmra.mrb[0].mxu0 %v646
        %v711 = vpop.f32.mrb[0].mxu0
        %v712 = vadd.f32 %v548, %v711
        %v713 = vpop.f32.mrb[0].mxu0
        %v714 = vpop.f32.mrb[0].mxu0
        %v715 = vadd.f32 %v551, %v714
        %v716 = vpop.f32.mrb[0].mxu0
        %717 = vmatprep.mubr.bf16.mxu0 0
        %718 = vmatmul.mubr.bf16.gmra.mrb[0].mxu0 %v649
        %v719 = vpop.f32.mrb[0].mxu0
        %v720 = vadd.f32 %v556, %v719
        %v721 = vpop.f32.mrb[0].mxu0
        %v722 = vpop.f32.mrb[0].mxu0
        %v723 = vadd.f32 %v559, %v722
        %v724 = vpop.f32.mrb[0].mxu0
        %725 = vmatprep.mubr.bf16.mxu0 0
        %726 = vmatmul.mubr.bf16.gmra.mrb[0].mxu0 %v652
        %v727 = vpop.f32.mrb[0].mxu0
        %v728 = vadd.f32 %v564, %v727
        %v729 = vpop.f32.mrb[0].mxu0
        %v730 = vpop.f32.mrb[0].mxu0
        %v731 = vadd.f32 %v567, %v730
        %v732 = vpop.f32.mrb[0].mxu0
        %733 = vmatprep.mubr.bf16.mxu0 0
        %734 = vmatmul.mubr.bf16.gmra.mrb[0].mxu0 %v655
        %v735 = vpop.f32.mrb[0].mxu0
        %v736 = vadd.f32 %v572, %v735
        %v737 = vpop.f32.mrb[0].mxu0
        %v738 = vpop.f32.mrb[0].mxu0
        %v739 = vadd.f32 %v575, %v738
        %v740 = vpop.f32.mrb[0].mxu0
        %741 = vmatprep.mubr.bf16.mxu0 0
        %742 = vmatmul.mubr.bf16.gmra.mrb[0].mxu0 %v658
        %v743 = vpop.f32.mrb[0].mxu0
        %v744 = vadd.f32 %v580, %v743
        %v745 = vpop.f32.mrb[0].mxu0
        %v746 = vpop.f32.mrb[0].mxu0
        %v747 = vadd.f32 %v583, %v746
        %v748 = vpop.f32.mrb[0].mxu0
        %749 = vmatprep.mubr.bf16.mxu0 0
        %750 = vmatmul.mubr.bf16.gmra.mrb[0].mxu0 %v661
        %v751 = vpop.f32.mrb[0].mxu0
        %v752 = vadd.f32 %v588, %v751
        %v753 = vpop.f32.mrb[0].mxu0
        %v754 = vpop.f32.mrb[0].mxu0
        %v755 = vadd.f32 %v591, %v754
        %v756 = vpop.f32.mrb[0].mxu0
        %757 = vmatprep.mubr.bf16.mxu0 0
        %758 = vmatmul.mubr.bf16.gmra.mrb[0].mxu0 %v664
        %v759 = vpop.f32.mrb[0].mxu0
        %v760 = vadd.f32 %v596, %v759
        %v761 = vpop.f32.mrb[0].mxu0
        %v762 = vpop.f32.mrb[0].mxu0
        %v763 = vadd.f32 %v599, %v762
        %v764 = vpop.f32.mrb[0].mxu0
        %765 = vdwg.mxu0
        %vm782 = vcmask 1042432
        %vm783 = vcmask 1046532
        %vm784 = vmor %vm782, %vm783
        %v785 = vrot.slane %v190, 5
        %v786 = vrot.slane %v785, 4
        %v787 = vrot.slane %v191, 5
        %v788 = vsel %vm784, %v786, %v787
        %v789 = vrot.slane %v192, 5
        %v790 = vrot.slane %v789, 4
        %v791 = vrot.slane %v193, 5
        %v792 = vsel %vm784, %v790, %v791
        %v793 = vrot.slane %v194, 5
        %v794 = vrot.slane %v793, 4
        %v795 = vrot.slane %v195, 5
        %v796 = vsel %vm784, %v794, %v795
        %v797 = vrot.slane %v196, 5
        %v798 = vrot.slane %v797, 4
        %v799 = vrot.slane %v197, 5
        %v800 = vsel %vm784, %v798, %v799
        %v801 = vrot.slane %v198, 5
        %v802 = vrot.slane %v801, 4
        %v803 = vrot.slane %v199, 5
        %v804 = vsel %vm784, %v802, %v803
        %v805 = vrot.slane %v200, 5
        %v806 = vrot.slane %v805, 4
        %v807 = vrot.slane %v201, 5
        %v808 = vsel %vm784, %v806, %v807
        %v809 = vrot.slane %v202, 5
        %v810 = vrot.slane %v809, 4
        %v811 = vrot.slane %v203, 5
        %v812 = vsel %vm784, %v810, %v811
        %v813 = vrot.slane %v204, 5
        %v814 = vrot.slane %v813, 4
        %v815 = vrot.slane %v205, 5
        %v816 = vsel %vm784, %v814, %v815
        %v817 = vrot.slane %v206, 5
        %v818 = vrot.slane %v817, 4
        %v819 = vrot.slane %v207, 5
        %v820 = vsel %vm784, %v818, %v819
        %v821 = vrot.slane %v208, 5
        %v822 = vrot.slane %v821, 4
        %v823 = vrot.slane %v209, 5
        %v824 = vsel %vm784, %v822, %v823
        %v825 = vrot.slane %v210, 5
        %v826 = vrot.slane %v825, 4
        %v827 = vrot.slane %v211, 5
        %v828 = vsel %vm784, %v826, %v827
        %v829 = vrot.slane %v212, 5
        %v830 = vrot.slane %v829, 4
        %v831 = vrot.slane %v213, 5
        %v832 = vsel %vm784, %v830, %v831
        %v833 = vrot.slane %v214, 5
        %v834 = vrot.slane %v833, 4
        %v835 = vrot.slane %v215, 5
        %v836 = vsel %vm784, %v834, %v835
        %v837 = vrot.slane %v216, 5
        %v838 = vrot.slane %v837, 4
        %v839 = vrot.slane %v217, 5
        %v840 = vsel %vm784, %v838, %v839
        %v841 = vrot.slane %v218, 5
        %v842 = vrot.slane %v841, 4
        %v843 = vrot.slane %v219, 5
        %v844 = vsel %vm784, %v842, %v843
        %v845 = vrot.slane %v220, 5
        %v846 = vrot.slane %v845, 4
        %v847 = vrot.slane %v221, 5
        %v848 = vsel %vm784, %v846, %v847
        %s849 = scalar_lea.vmem %s182, 8
        %v850 = vld [vmem:[%s849] sm:$0xf]
        %v851 = vunpack.c.l.b16 %v788
        %v852 = vunpack.c.l.b16 %v792
        %v853 = vunpack.c.l.b16 %v796
        %v854 = vunpack.c.l.b16 %v800
        %v855 = vunpack.c.l.b16 %v804
        %v856 = vunpack.c.l.b16 %v808
        %v857 = vunpack.c.l.b16 %v812
        %v858 = vunpack.c.l.b16 %v816
        %v859 = vunpack.c.l.b16 %v820
        %v860 = vunpack.c.l.b16 %v824
        %v861 = vunpack.c.l.b16 %v828
        %v862 = vunpack.c.l.b16 %v832
        %v863 = vunpack.c.l.b16 %v836
        %v864 = vunpack.c.l.b16 %v840
        %v865 = vunpack.c.l.b16 %v844
        %v866 = vunpack.c.l.b16 %v848
        %v867 = vpack.c.b16 %v852, %v851
        %v868 = vpack.c.b16 %v854, %v853
        %v869 = vpack.c.b16 %v856, %v855
        %v870 = vpack.c.b16 %v858, %v857
        %v871 = vpack.c.b16 %v860, %v859
        %v872 = vpack.c.b16 %v862, %v861
        %v873 = vpack.c.b16 %v864, %v863
        %v874 = vpack.c.b16 %v866, %v865
        %v876 = vsel %vm476, %v867, 0
        %v879 = vsel %vm476, %v868, 0
        %v882 = vsel %vm476, %v869, 0
        %v885 = vsel %vm476, %v870, 0
        %v888 = vsel %vm476, %v871, 0
        %v891 = vsel %vm476, %v872, 0
        %v894 = vsel %vm476, %v873, 0
        %v897 = vsel %vm476, %v874, 0
        %v900 = vsel %vm501, %v850, 0
        %902 = vmatprep.subr.bf16.mxu0 0
        %903 = vmatpush1.bf16.msra.mxu0 %v900
        %904 = vmatprep.subr.bf16.mxu0 0
        %905 = vmatpush1.bf16.msra.mxu0 0
        %906 = vmatprep.subr.bf16.mxu0 0
        %907 = vmatpush1.bf16.msra.mxu0 0
        %908 = vmatprep.subr.bf16.mxu0 0
        %909 = vmatpush1.bf16.msra.mxu0 0
        %910 = vmatprep.subr.bf16.mxu0 0
        %911 = vmatpush1.bf16.msra.mxu0 0
        %912 = vmatprep.subr.bf16.mxu0 0
        %913 = vmatpush1.bf16.msra.mxu0 0
        %914 = vmatprep.subr.bf16.mxu0 0
        %915 = vmatpush1.bf16.msra.mxu0 0
        %916 = vmatprep.subr.bf16.mxu0 0
        %917 = vmatpush1.bf16.msra.mxu0 0
        %918 = vmatprep.subr.bf16.mxu0 0
        %919 = vmatpush1.bf16.msra.mxu0 0
        %920 = vmatprep.subr.bf16.mxu0 0
        %921 = vmatpush1.bf16.msra.mxu0 0
        %922 = vmatprep.subr.bf16.mxu0 0
        %923 = vmatpush1.bf16.msra.mxu0 0
        %924 = vmatprep.subr.bf16.mxu0 0
        %925 = vmatpush1.bf16.msra.mxu0 0
        %926 = vmatprep.subr.bf16.mxu0 0
        %927 = vmatpush1.bf16.msra.mxu0 0
        %928 = vmatprep.subr.bf16.mxu0 0
        %929 = vmatpush1.bf16.msra.mxu0 0
        %930 = vmatprep.subr.bf16.mxu0 0
        %931 = vmatpush1.bf16.msra.mxu0 0
        %932 = vmatprep.subr.bf16.mxu0 0
        %933 = vmatpush1.bf16.msra.mxu0 0
        %934 = vmatprep.mubr.bf16.mxu0 0
        %935 = vmatmul.mubr.bf16.gmra.mrb[0].mxu0 %v876
        %v936 = vpop.f32.mrb[0].mxu0
        %v937 = vadd.f32 0.0, %v936
        %v938 = vpop.f32.mrb[0].mxu0
        %v939 = vpop.f32.mrb[0].mxu0
        %v940 = vadd.f32 0.0, %v939
        %v941 = vpop.f32.mrb[0].mxu0
        %942 = vmatprep.mubr.bf16.mxu0 0
        %943 = vmatmul.mubr.bf16.gmra.mrb[0].mxu0 %v879
        %v944 = vpop.f32.mrb[0].mxu0
        %v945 = vadd.f32 0.0, %v944
        %v946 = vpop.f32.mrb[0].mxu0
        %v947 = vpop.f32.mrb[0].mxu0
        %v948 = vadd.f32 0.0, %v947
        %v949 = vpop.f32.mrb[0].mxu0
        %950 = vmatprep.mubr.bf16.mxu0 0
        %951 = vmatmul.mubr.bf16.gmra.mrb[0].mxu0 %v882
        %v952 = vpop.f32.mrb[0].mxu0
        %v953 = vadd.f32 0.0, %v952
        %v954 = vpop.f32.mrb[0].mxu0
        %v955 = vpop.f32.mrb[0].mxu0
        %v956 = vadd.f32 0.0, %v955
        %v957 = vpop.f32.mrb[0].mxu0
        %958 = vmatprep.mubr.bf16.mxu0 0
        %959 = vmatmul.mubr.bf16.gmra.mrb[0].mxu0 %v885
        %v960 = vpop.f32.mrb[0].mxu0
        %v961 = vadd.f32 0.0, %v960
        %v962 = vpop.f32.mrb[0].mxu0
        %v963 = vpop.f32.mrb[0].mxu0
        %v964 = vadd.f32 0.0, %v963
        %v965 = vpop.f32.mrb[0].mxu0
        %966 = vmatprep.mubr.bf16.mxu0 0
        %967 = vmatmul.mubr.bf16.gmra.mrb[0].mxu0 %v888
        %v968 = vpop.f32.mrb[0].mxu0
        %v969 = vadd.f32 0.0, %v968
        %v970 = vpop.f32.mrb[0].mxu0
        %v971 = vpop.f32.mrb[0].mxu0
        %v972 = vadd.f32 0.0, %v971
        %v973 = vpop.f32.mrb[0].mxu0
        %974 = vmatprep.mubr.bf16.mxu0 0
        %975 = vmatmul.mubr.bf16.gmra.mrb[0].mxu0 %v891
        %v976 = vpop.f32.mrb[0].mxu0
        %v977 = vadd.f32 0.0, %v976
        %v978 = vpop.f32.mrb[0].mxu0
        %v979 = vpop.f32.mrb[0].mxu0
        %v980 = vadd.f32 0.0, %v979
        %v981 = vpop.f32.mrb[0].mxu0
        %982 = vmatprep.mubr.bf16.mxu0 0
        %983 = vmatmul.mubr.bf16.gmra.mrb[0].mxu0 %v894
        %v984 = vpop.f32.mrb[0].mxu0
        %v985 = vadd.f32 0.0, %v984
        %v986 = vpop.f32.mrb[0].mxu0
        %v987 = vpop.f32.mrb[0].mxu0
        %v988 = vadd.f32 0.0, %v987
        %v989 = vpop.f32.mrb[0].mxu0
        %990 = vmatprep.mubr.bf16.mxu0 0
        %991 = vmatmul.mubr.bf16.gmra.mrb[0].mxu0 %v897
        %v992 = vpop.f32.mrb[0].mxu0
        %v993 = vadd.f32 0.0, %v992
        %v994 = vpop.f32.mrb[0].mxu0
        %v995 = vpop.f32.mrb[0].mxu0
        %v996 = vadd.f32 0.0, %v995
        %v997 = vpop.f32.mrb[0].mxu0
        %998 = vdwg.mxu0
        %v999 = vadd.f32 %v704, %v937
        %v1000 = vadd.f32 %v707, %v940
        %v1001 = vadd.f32 %v712, %v945
        %v1002 = vadd.f32 %v715, %v948
        %v1003 = vadd.f32 %v720, %v953
        %v1004 = vadd.f32 %v723, %v956
        %v1005 = vadd.f32 %v728, %v961
        %v1006 = vadd.f32 %v731, %v964
        %v1007 = vadd.f32 %v736, %v969
        %v1008 = vadd.f32 %v739, %v972
        %v1009 = vadd.f32 %v744, %v977
        %v1010 = vadd.f32 %v747, %v980
        %v1011 = vadd.f32 %v752, %v985
        %v1012 = vadd.f32 %v755, %v988
        %v1013 = vadd.f32 %v760, %v993
        %v1014 = vadd.f32 %v763, %v996
        %s1015 = sadd.s32 %s186, 1
        %s1016 = smul.u32 %s1015, 2
        %s1017 = smul.addr %s1016, 4
        %s1018 = scalar_lea.vmem %s0, %s1017
        %v1019 = vld [vmem:[%s1018] sm:$0xf]
        %v1020 = vld [vmem:[%s1018 + $0x4] sm:$0x1]
        %v1021 = vld [vmem:[%s1018 + $0x8] sm:$0xf]
        %v1022 = vld [vmem:[%s1018 + $0xc] sm:$0x1]
        %v1023 = vld [vmem:[%s1018 + $0x10] sm:$0xf]
        %v1024 = vld [vmem:[%s1018 + $0x14] sm:$0x1]
        %v1025 = vld [vmem:[%s1018 + $0x18] sm:$0xf]
        %v1026 = vld [vmem:[%s1018 + $0x1c] sm:$0x1]
        %v1027 = vld [vmem:[%s1018 + $0x20] sm:$0xf]
        %v1028 = vld [vmem:[%s1018 + $0x24] sm:$0x1]
        %v1029 = vld [vmem:[%s1018 + $0x28] sm:$0xf]
        %v1030 = vld [vmem:[%s1018 + $0x2c] sm:$0x1]
        %v1031 = vld [vmem:[%s1018 + $0x30] sm:$0xf]
        %v1032 = vld [vmem:[%s1018 + $0x34] sm:$0x1]
        %v1033 = vld [vmem:[%s1018 + $0x38] sm:$0xf]
        %v1034 = vld [vmem:[%s1018 + $0x3c] sm:$0x1]
        %v1035 = vld [vmem:[%s1018 + $0x50] sm:$0xf]
        %v1036 = vld [vmem:[%s1018 + $0x54] sm:$0x1]
        %v1037 = vld [vmem:[%s1018 + $0x58] sm:$0xf]
        %v1038 = vld [vmem:[%s1018 + $0x5c] sm:$0x1]
        %v1039 = vld [vmem:[%s1018 + $0x60] sm:$0xf]
        %v1040 = vld [vmem:[%s1018 + $0x64] sm:$0x1]
        %v1041 = vld [vmem:[%s1018 + $0x68] sm:$0xf]
        %v1042 = vld [vmem:[%s1018 + $0x6c] sm:$0x1]
        %v1043 = vld [vmem:[%s1018 + $0x70] sm:$0xf]
        %v1044 = vld [vmem:[%s1018 + $0x74] sm:$0x1]
        %v1045 = vld [vmem:[%s1018 + $0x78] sm:$0xf]
        %v1046 = vld [vmem:[%s1018 + $0x7c] sm:$0x1]
        %v1047 = vld [vmem:[%s1018 + $0x80] sm:$0xf]
        %v1048 = vld [vmem:[%s1018 + $0x84] sm:$0x1]
        %v1049 = vld [vmem:[%s1018 + $0x88] sm:$0xf]
        %v1050 = vld [vmem:[%s1018 + $0x8c] sm:$0x1]
        %s1051 = scalar_lea.vmem %s182, 12
        %v1052 = vld [vmem:[%s1051] sm:$0xf]
        %v1069 = vunpack.c.l.b16 %v1019
        %v1070 = vunpack.c.l.b16 %v1021
        %v1071 = vunpack.c.l.b16 %v1023
        %v1072 = vunpack.c.l.b16 %v1025
        %v1073 = vunpack.c.l.b16 %v1027
        %v1074 = vunpack.c.l.b16 %v1029
        %v1075 = vunpack.c.l.b16 %v1031
        %v1076 = vunpack.c.l.b16 %v1033
        %v1077 = vunpack.c.l.b16 %v1035
        %v1078 = vunpack.c.l.b16 %v1037
        %v1079 = vunpack.c.l.b16 %v1039
        %v1080 = vunpack.c.l.b16 %v1041
        %v1081 = vunpack.c.l.b16 %v1043
        %v1082 = vunpack.c.l.b16 %v1045
        %v1083 = vunpack.c.l.b16 %v1047
        %v1084 = vunpack.c.l.b16 %v1049
        %v1085 = vpack.c.b16 %v1070, %v1069
        %v1086 = vpack.c.b16 %v1072, %v1071
        %v1087 = vpack.c.b16 %v1074, %v1073
        %v1088 = vpack.c.b16 %v1076, %v1075
        %v1089 = vpack.c.b16 %v1078, %v1077
        %v1090 = vpack.c.b16 %v1080, %v1079
        %v1091 = vpack.c.b16 %v1082, %v1081
        %v1092 = vpack.c.b16 %v1084, %v1083
        %v1094 = vsel %vm476, %v1085, 0
        %v1097 = vsel %vm476, %v1086, 0
        %v1100 = vsel %vm476, %v1087, 0
        %v1103 = vsel %vm476, %v1088, 0
        %v1106 = vsel %vm476, %v1089, 0
        %v1109 = vsel %vm476, %v1090, 0
        %v1112 = vsel %vm476, %v1091, 0
        %v1115 = vsel %vm476, %v1092, 0
        %v1118 = vsel %vm501, %v1052, 0
        %1120 = vmatprep.subr.bf16.mxu0 0
        %1121 = vmatpush1.bf16.msra.mxu0 %v1118
        %1122 = vmatprep.subr.bf16.mxu0 0
        %1123 = vmatpush1.bf16.msra.mxu0 0
        %1124 = vmatprep.subr.bf16.mxu0 0
        %1125 = vmatpush1.bf16.msra.mxu0 0
        %1126 = vmatprep.subr.bf16.mxu0 0
        %1127 = vmatpush1.bf16.msra.mxu0 0
        %1128 = vmatprep.subr.bf16.mxu0 0
        %1129 = vmatpush1.bf16.msra.mxu0 0
        %1130 = vmatprep.subr.bf16.mxu0 0
        %1131 = vmatpush1.bf16.msra.mxu0 0
        %1132 = vmatprep.subr.bf16.mxu0 0
        %1133 = vmatpush1.bf16.msra.mxu0 0
        %1134 = vmatprep.subr.bf16.mxu0 0
        %1135 = vmatpush1.bf16.msra.mxu0 0
        %1136 = vmatprep.subr.bf16.mxu0 0
        %1137 = vmatpush1.bf16.msra.mxu0 0
        %1138 = vmatprep.subr.bf16.mxu0 0
        %1139 = vmatpush1.bf16.msra.mxu0 0
        %1140 = vmatprep.subr.bf16.mxu0 0
        %1141 = vmatpush1.bf16.msra.mxu0 0
        %1142 = vmatprep.subr.bf16.mxu0 0
        %1143 = vmatpush1.bf16.msra.mxu0 0
        %1144 = vmatprep.subr.bf16.mxu0 0
        %1145 = vmatpush1.bf16.msra.mxu0 0
        %1146 = vmatprep.subr.bf16.mxu0 0
        %1147 = vmatpush1.bf16.msra.mxu0 0
        %1148 = vmatprep.subr.bf16.mxu0 0
        %1149 = vmatpush1.bf16.msra.mxu0 0
        %1150 = vmatprep.subr.bf16.mxu0 0
        %1151 = vmatpush1.bf16.msra.mxu0 0
        %1152 = vmatprep.mubr.bf16.mxu0 0
        %1153 = vmatmul.mubr.bf16.gmra.mrb[0].mxu0 %v1094
        %v1154 = vpop.f32.mrb[0].mxu0
        %v1155 = vadd.f32 0.0, %v1154
        %v1156 = vpop.f32.mrb[0].mxu0
        %v1157 = vpop.f32.mrb[0].mxu0
        %v1158 = vadd.f32 0.0, %v1157
        %v1159 = vpop.f32.mrb[0].mxu0
        %1160 = vmatprep.mubr.bf16.mxu0 0
        %1161 = vmatmul.mubr.bf16.gmra.mrb[0].mxu0 %v1097
        %v1162 = vpop.f32.mrb[0].mxu0
        %v1163 = vadd.f32 0.0, %v1162
        %v1164 = vpop.f32.mrb[0].mxu0
        %v1165 = vpop.f32.mrb[0].mxu0
        %v1166 = vadd.f32 0.0, %v1165
        %v1167 = vpop.f32.mrb[0].mxu0
        %1168 = vmatprep.mubr.bf16.mxu0 0
        %1169 = vmatmul.mubr.bf16.gmra.mrb[0].mxu0 %v1100
        %v1170 = vpop.f32.mrb[0].mxu0
        %v1171 = vadd.f32 0.0, %v1170
        %v1172 = vpop.f32.mrb[0].mxu0
        %v1173 = vpop.f32.mrb[0].mxu0
        %v1174 = vadd.f32 0.0, %v1173
        %v1175 = vpop.f32.mrb[0].mxu0
        %1176 = vmatprep.mubr.bf16.mxu0 0
        %1177 = vmatmul.mubr.bf16.gmra.mrb[0].mxu0 %v1103
        %v1178 = vpop.f32.mrb[0].mxu0
        %v1179 = vadd.f32 0.0, %v1178
        %v1180 = vpop.f32.mrb[0].mxu0
        %v1181 = vpop.f32.mrb[0].mxu0
        %v1182 = vadd.f32 0.0, %v1181
        %v1183 = vpop.f32.mrb[0].mxu0
        %1184 = vmatprep.mubr.bf16.mxu0 0
        %1185 = vmatmul.mubr.bf16.gmra.mrb[0].mxu0 %v1106
        %v1186 = vpop.f32.mrb[0].mxu0
        %v1187 = vadd.f32 0.0, %v1186
        %v1188 = vpop.f32.mrb[0].mxu0
        %v1189 = vpop.f32.mrb[0].mxu0
        %v1190 = vadd.f32 0.0, %v1189
        %v1191 = vpop.f32.mrb[0].mxu0
        %1192 = vmatprep.mubr.bf16.mxu0 0
        %1193 = vmatmul.mubr.bf16.gmra.mrb[0].mxu0 %v1109
        %v1194 = vpop.f32.mrb[0].mxu0
        %v1195 = vadd.f32 0.0, %v1194
        %v1196 = vpop.f32.mrb[0].mxu0
        %v1197 = vpop.f32.mrb[0].mxu0
        %v1198 = vadd.f32 0.0, %v1197
        %v1199 = vpop.f32.mrb[0].mxu0
        %1200 = vmatprep.mubr.bf16.mxu0 0
        %1201 = vmatmul.mubr.bf16.gmra.mrb[0].mxu0 %v1112
        %v1202 = vpop.f32.mrb[0].mxu0
        %v1203 = vadd.f32 0.0, %v1202
        %v1204 = vpop.f32.mrb[0].mxu0
        %v1205 = vpop.f32.mrb[0].mxu0
        %v1206 = vadd.f32 0.0, %v1205
        %v1207 = vpop.f32.mrb[0].mxu0
        %1208 = vmatprep.mubr.bf16.mxu0 0
        %1209 = vmatmul.mubr.bf16.gmra.mrb[0].mxu0 %v1115
        %v1210 = vpop.f32.mrb[0].mxu0
        %v1211 = vadd.f32 0.0, %v1210
        %v1212 = vpop.f32.mrb[0].mxu0
        %v1213 = vpop.f32.mrb[0].mxu0
        %v1214 = vadd.f32 0.0, %v1213
        %v1215 = vpop.f32.mrb[0].mxu0
        %1216 = vdwg.mxu0
        %v1217 = vadd.f32 %v999, %v1155
        %v1218 = vadd.f32 %v1000, %v1158
        %v1219 = vadd.f32 %v1001, %v1163
        %v1220 = vadd.f32 %v1002, %v1166
        %v1221 = vadd.f32 %v1003, %v1171
        %v1222 = vadd.f32 %v1004, %v1174
        %v1223 = vadd.f32 %v1005, %v1179
        %v1224 = vadd.f32 %v1006, %v1182
        %v1225 = vadd.f32 %v1007, %v1187
        %v1226 = vadd.f32 %v1008, %v1190
        %v1227 = vadd.f32 %v1009, %v1195
        %v1228 = vadd.f32 %v1010, %v1198
        %v1229 = vadd.f32 %v1011, %v1203
        %v1230 = vadd.f32 %v1012, %v1206
        %v1231 = vadd.f32 %v1013, %v1211
        %v1232 = vadd.f32 %v1014, %v1214
        %v1234 = vshrl.u32 %v1019, 16
        %v1236 = vrot.slane %v1234, 4
        %v1237 = vshll.u32 %v1019, 16
        %v1239 = vrot.slane %v1237, 5
        %v1240 = vor.u32 %v1236, %v1239
        %v1241 = vrot.slane %v1240, 4
        %v1243 = vshll.u32 %v1020, 16
        %v1245 = vrot.slane %v1243, 5
        %v1246 = vsel %vm225, %v1241, %v1245
        %v1248 = vshrl.u32 %v1021, 16
        %v1250 = vrot.slane %v1248, 4
        %v1251 = vshll.u32 %v1021, 16
        %v1253 = vrot.slane %v1251, 5
        %v1254 = vor.u32 %v1250, %v1253
        %v1255 = vrot.slane %v1254, 4
        %v1257 = vshll.u32 %v1022, 16
        %v1259 = vrot.slane %v1257, 5
        %v1260 = vsel %vm225, %v1255, %v1259
        %v1262 = vshrl.u32 %v1023, 16
        %v1264 = vrot.slane %v1262, 4
        %v1265 = vshll.u32 %v1023, 16
        %v1267 = vrot.slane %v1265, 5
        %v1268 = vor.u32 %v1264, %v1267
        %v1269 = vrot.slane %v1268, 4
        %v1271 = vshll.u32 %v1024, 16
        %v1273 = vrot.slane %v1271, 5
        %v1274 = vsel %vm225, %v1269, %v1273
        %v1276 = vshrl.u32 %v1025, 16
        %v1278 = vrot.slane %v1276, 4
        %v1279 = vshll.u32 %v1025, 16
        %v1281 = vrot.slane %v1279, 5
        %v1282 = vor.u32 %v1278, %v1281
        %v1283 = vrot.slane %v1282, 4
        %v1285 = vshll.u32 %v1026, 16
        %v1287 = vrot.slane %v1285, 5
        %v1288 = vsel %vm225, %v1283, %v1287
        %v1290 = vshrl.u32 %v1027, 16
        %v1292 = vrot.slane %v1290, 4
        %v1293 = vshll.u32 %v1027, 16
        %v1295 = vrot.slane %v1293, 5
        %v1296 = vor.u32 %v1292, %v1295
        %v1297 = vrot.slane %v1296, 4
        %v1299 = vshll.u32 %v1028, 16
        %v1301 = vrot.slane %v1299, 5
        %v1302 = vsel %vm225, %v1297, %v1301
        %v1304 = vshrl.u32 %v1029, 16
        %v1306 = vrot.slane %v1304, 4
        %v1307 = vshll.u32 %v1029, 16
        %v1309 = vrot.slane %v1307, 5
        %v1310 = vor.u32 %v1306, %v1309
        %v1311 = vrot.slane %v1310, 4
        %v1313 = vshll.u32 %v1030, 16
        %v1315 = vrot.slane %v1313, 5
        %v1316 = vsel %vm225, %v1311, %v1315
        %v1318 = vshrl.u32 %v1031, 16
        %v1320 = vrot.slane %v1318, 4
        %v1321 = vshll.u32 %v1031, 16
        %v1323 = vrot.slane %v1321, 5
        %v1324 = vor.u32 %v1320, %v1323
        %v1325 = vrot.slane %v1324, 4
        %v1327 = vshll.u32 %v1032, 16
        %v1329 = vrot.slane %v1327, 5
        %v1330 = vsel %vm225, %v1325, %v1329
        %v1332 = vshrl.u32 %v1033, 16
        %v1334 = vrot.slane %v1332, 4
        %v1335 = vshll.u32 %v1033, 16
        %v1337 = vrot.slane %v1335, 5
        %v1338 = vor.u32 %v1334, %v1337
        %v1339 = vrot.slane %v1338, 4
        %v1341 = vshll.u32 %v1034, 16
        %v1343 = vrot.slane %v1341, 5
        %v1344 = vsel %vm225, %v1339, %v1343
        %v1346 = vshrl.u32 %v1035, 16
        %v1348 = vrot.slane %v1346, 4
        %v1349 = vshll.u32 %v1035, 16
        %v1351 = vrot.slane %v1349, 5
        %v1352 = vor.u32 %v1348, %v1351
        %v1353 = vrot.slane %v1352, 4
        %v1355 = vshll.u32 %v1036, 16
        %v1357 = vrot.slane %v1355, 5
        %v1358 = vsel %vm225, %v1353, %v1357
        %v1360 = vshrl.u32 %v1037, 16
        %v1362 = vrot.slane %v1360, 4
        %v1363 = vshll.u32 %v1037, 16
        %v1365 = vrot.slane %v1363, 5
        %v1366 = vor.u32 %v1362, %v1365
        %v1367 = vrot.slane %v1366, 4
        %v1369 = vshll.u32 %v1038, 16
        %v1371 = vrot.slane %v1369, 5
        %v1372 = vsel %vm225, %v1367, %v1371
        %v1374 = vshrl.u32 %v1039, 16
        %v1376 = vrot.slane %v1374, 4
        %v1377 = vshll.u32 %v1039, 16
        %v1379 = vrot.slane %v1377, 5
        %v1380 = vor.u32 %v1376, %v1379
        %v1381 = vrot.slane %v1380, 4
        %v1383 = vshll.u32 %v1040, 16
        %v1385 = vrot.slane %v1383, 5
        %v1386 = vsel %vm225, %v1381, %v1385
        %v1388 = vshrl.u32 %v1041, 16
        %v1390 = vrot.slane %v1388, 4
        %v1391 = vshll.u32 %v1041, 16
        %v1393 = vrot.slane %v1391, 5
        %v1394 = vor.u32 %v1390, %v1393
        %v1395 = vrot.slane %v1394, 4
        %v1397 = vshll.u32 %v1042, 16
        %v1399 = vrot.slane %v1397, 5
        %v1400 = vsel %vm225, %v1395, %v1399
        %v1402 = vshrl.u32 %v1043, 16
        %v1404 = vrot.slane %v1402, 4
        %v1405 = vshll.u32 %v1043, 16
        %v1407 = vrot.slane %v1405, 5
        %v1408 = vor.u32 %v1404, %v1407
        %v1409 = vrot.slane %v1408, 4
        %v1411 = vshll.u32 %v1044, 16
        %v1413 = vrot.slane %v1411, 5
        %v1414 = vsel %vm225, %v1409, %v1413
        %v1416 = vshrl.u32 %v1045, 16
        %v1418 = vrot.slane %v1416, 4
        %v1419 = vshll.u32 %v1045, 16
        %v1421 = vrot.slane %v1419, 5
        %v1422 = vor.u32 %v1418, %v1421
        %v1423 = vrot.slane %v1422, 4
        %v1425 = vshll.u32 %v1046, 16
        %v1427 = vrot.slane %v1425, 5
        %v1428 = vsel %vm225, %v1423, %v1427
        %v1430 = vshrl.u32 %v1047, 16
        %v1432 = vrot.slane %v1430, 4
        %v1433 = vshll.u32 %v1047, 16
        %v1435 = vrot.slane %v1433, 5
        %v1436 = vor.u32 %v1432, %v1435
        %v1437 = vrot.slane %v1436, 4
        %v1439 = vshll.u32 %v1048, 16
        %v1441 = vrot.slane %v1439, 5
        %v1442 = vsel %vm225, %v1437, %v1441
        %v1444 = vshrl.u32 %v1049, 16
        %v1446 = vrot.slane %v1444, 4
        %v1447 = vshll.u32 %v1049, 16
        %v1449 = vrot.slane %v1447, 5
        %v1450 = vor.u32 %v1446, %v1449
        %v1451 = vrot.slane %v1450, 4
        %v1453 = vshll.u32 %v1050, 16
        %v1455 = vrot.slane %v1453, 5
        %v1456 = vsel %vm225, %v1451, %v1455
        %s1457 = scalar_lea.vmem %s182, 16
        %v1458 = vld [vmem:[%s1457] sm:$0xf]
        %v1459 = vunpack.c.l.b16 %v1246
        %v1460 = vunpack.c.l.b16 %v1260
        %v1461 = vunpack.c.l.b16 %v1274
        %v1462 = vunpack.c.l.b16 %v1288
        %v1463 = vunpack.c.l.b16 %v1302
        %v1464 = vunpack.c.l.b16 %v1316
        %v1465 = vunpack.c.l.b16 %v1330
        %v1466 = vunpack.c.l.b16 %v1344
        %v1467 = vunpack.c.l.b16 %v1358
        %v1468 = vunpack.c.l.b16 %v1372
        %v1469 = vunpack.c.l.b16 %v1386
        %v1470 = vunpack.c.l.b16 %v1400
        %v1471 = vunpack.c.l.b16 %v1414
        %v1472 = vunpack.c.l.b16 %v1428
        %v1473 = vunpack.c.l.b16 %v1442
        %v1474 = vunpack.c.l.b16 %v1456
        %v1475 = vpack.c.b16 %v1460, %v1459
        %v1476 = vpack.c.b16 %v1462, %v1461
        %v1477 = vpack.c.b16 %v1464, %v1463
        %v1478 = vpack.c.b16 %v1466, %v1465
        %v1479 = vpack.c.b16 %v1468, %v1467
        %v1480 = vpack.c.b16 %v1470, %v1469
        %v1481 = vpack.c.b16 %v1472, %v1471
        %v1482 = vpack.c.b16 %v1474, %v1473
        %v1484 = vsel %vm476, %v1475, 0
        %v1487 = vsel %vm476, %v1476, 0
        %v1490 = vsel %vm476, %v1477, 0
        %v1493 = vsel %vm476, %v1478, 0
        %v1496 = vsel %vm476, %v1479, 0
        %v1499 = vsel %vm476, %v1480, 0
        %v1502 = vsel %vm476, %v1481, 0
        %v1505 = vsel %vm476, %v1482, 0
        %v1508 = vsel %vm501, %v1458, 0
        %1510 = vmatprep.subr.bf16.mxu0 0
        %1511 = vmatpush1.bf16.msra.mxu0 %v1508
        %1512 = vmatprep.subr.bf16.mxu0 0
        %1513 = vmatpush1.bf16.msra.mxu0 0
        %1514 = vmatprep.subr.bf16.mxu0 0
        %1515 = vmatpush1.bf16.msra.mxu0 0
        %1516 = vmatprep.subr.bf16.mxu0 0
        %1517 = vmatpush1.bf16.msra.mxu0 0
        %1518 = vmatprep.subr.bf16.mxu0 0
        %1519 = vmatpush1.bf16.msra.mxu0 0
        %1520 = vmatprep.subr.bf16.mxu0 0
        %1521 = vmatpush1.bf16.msra.mxu0 0
        %1522 = vmatprep.subr.bf16.mxu0 0
        %1523 = vmatpush1.bf16.msra.mxu0 0
        %1524 = vmatprep.subr.bf16.mxu0 0
        %1525 = vmatpush1.bf16.msra.mxu0 0
        %1526 = vmatprep.subr.bf16.mxu0 0
        %1527 = vmatpush1.bf16.msra.mxu0 0
        %1528 = vmatprep.subr.bf16.mxu0 0
        %1529 = vmatpush1.bf16.msra.mxu0 0
        %1530 = vmatprep.subr.bf16.mxu0 0
        %1531 = vmatpush1.bf16.msra.mxu0 0
        %1532 = vmatprep.subr.bf16.mxu0 0
        %1533 = vmatpush1.bf16.msra.mxu0 0
        %1534 = vmatprep.subr.bf16.mxu0 0
        %1535 = vmatpush1.bf16.msra.mxu0 0
        %1536 = vmatprep.subr.bf16.mxu0 0
        %1537 = vmatpush1.bf16.msra.mxu0 0
        %1538 = vmatprep.subr.bf16.mxu0 0
        %1539 = vmatpush1.bf16.msra.mxu0 0
        %1540 = vmatprep.subr.bf16.mxu0 0
        %1541 = vmatpush1.bf16.msra.mxu0 0
        %1542 = vmatprep.mubr.bf16.mxu0 0
        %1543 = vmatmul.mubr.bf16.gmra.mrb[0].mxu0 %v1484
        %v1544 = vpop.f32.mrb[0].mxu0
        %v1545 = vadd.f32 0.0, %v1544
        %v1546 = vpop.f32.mrb[0].mxu0
        %v1547 = vpop.f32.mrb[0].mxu0
        %v1548 = vadd.f32 0.0, %v1547
        %v1549 = vpop.f32.mrb[0].mxu0
        %1550 = vmatprep.mubr.bf16.mxu0 0
        %1551 = vmatmul.mubr.bf16.gmra.mrb[0].mxu0 %v1487
        %v1552 = vpop.f32.mrb[0].mxu0
        %v1553 = vadd.f32 0.0, %v1552
        %v1554 = vpop.f32.mrb[0].mxu0
        %v1555 = vpop.f32.mrb[0].mxu0
        %v1556 = vadd.f32 0.0, %v1555
        %v1557 = vpop.f32.mrb[0].mxu0
        %1558 = vmatprep.mubr.bf16.mxu0 0
        %1559 = vmatmul.mubr.bf16.gmra.mrb[0].mxu0 %v1490
        %v1560 = vpop.f32.mrb[0].mxu0
        %v1561 = vadd.f32 0.0, %v1560
        %v1562 = vpop.f32.mrb[0].mxu0
        %v1563 = vpop.f32.mrb[0].mxu0
        %v1564 = vadd.f32 0.0, %v1563
        %v1565 = vpop.f32.mrb[0].mxu0
        %1566 = vmatprep.mubr.bf16.mxu0 0
        %1567 = vmatmul.mubr.bf16.gmra.mrb[0].mxu0 %v1493
        %v1568 = vpop.f32.mrb[0].mxu0
        %v1569 = vadd.f32 0.0, %v1568
        %v1570 = vpop.f32.mrb[0].mxu0
        %v1571 = vpop.f32.mrb[0].mxu0
        %v1572 = vadd.f32 0.0, %v1571
        %v1573 = vpop.f32.mrb[0].mxu0
        %1574 = vmatprep.mubr.bf16.mxu0 0
        %1575 = vmatmul.mubr.bf16.gmra.mrb[0].mxu0 %v1496
        %v1576 = vpop.f32.mrb[0].mxu0
        %v1577 = vadd.f32 0.0, %v1576
        %v1578 = vpop.f32.mrb[0].mxu0
        %v1579 = vpop.f32.mrb[0].mxu0
        %v1580 = vadd.f32 0.0, %v1579
        %v1581 = vpop.f32.mrb[0].mxu0
        %1582 = vmatprep.mubr.bf16.mxu0 0
        %1583 = vmatmul.mubr.bf16.gmra.mrb[0].mxu0 %v1499
        %v1584 = vpop.f32.mrb[0].mxu0
        %v1585 = vadd.f32 0.0, %v1584
        %v1586 = vpop.f32.mrb[0].mxu0
        %v1587 = vpop.f32.mrb[0].mxu0
        %v1588 = vadd.f32 0.0, %v1587
        %v1589 = vpop.f32.mrb[0].mxu0
        %1590 = vmatprep.mubr.bf16.mxu0 0
        %1591 = vmatmul.mubr.bf16.gmra.mrb[0].mxu0 %v1502
        %v1592 = vpop.f32.mrb[0].mxu0
        %v1593 = vadd.f32 0.0, %v1592
        %v1594 = vpop.f32.mrb[0].mxu0
        %v1595 = vpop.f32.mrb[0].mxu0
        %v1596 = vadd.f32 0.0, %v1595
        %v1597 = vpop.f32.mrb[0].mxu0
        %1598 = vmatprep.mubr.bf16.mxu0 0
        %1599 = vmatmul.mubr.bf16.gmra.mrb[0].mxu0 %v1505
        %v1600 = vpop.f32.mrb[0].mxu0
        %v1601 = vadd.f32 0.0, %v1600
        %v1602 = vpop.f32.mrb[0].mxu0
        %v1603 = vpop.f32.mrb[0].mxu0
        %v1604 = vadd.f32 0.0, %v1603
        %v1605 = vpop.f32.mrb[0].mxu0
        %1606 = vdwg.mxu0
        %v1607 = vadd.f32 %v1217, %v1545
        %v1608 = vadd.f32 %v1218, %v1548
        %v1609 = vadd.f32 %v1219, %v1553
        %v1610 = vadd.f32 %v1220, %v1556
        %v1611 = vadd.f32 %v1221, %v1561
        %v1612 = vadd.f32 %v1222, %v1564
        %v1613 = vadd.f32 %v1223, %v1569
        %v1614 = vadd.f32 %v1224, %v1572
        %v1615 = vadd.f32 %v1225, %v1577
        %v1616 = vadd.f32 %v1226, %v1580
        %v1617 = vadd.f32 %v1227, %v1585
        %v1618 = vadd.f32 %v1228, %v1588
        %v1619 = vadd.f32 %v1229, %v1593
        %v1620 = vadd.f32 %v1230, %v1596
        %v1621 = vadd.f32 %v1231, %v1601
        %v1622 = vadd.f32 %v1232, %v1604
        %v1639 = vrot.slane %v1019, 5
        %v1640 = vrot.slane %v1639, 4
        %v1641 = vrot.slane %v1020, 5
        %v1642 = vsel %vm784, %v1640, %v1641
        %v1643 = vrot.slane %v1021, 5
        %v1644 = vrot.slane %v1643, 4
        %v1645 = vrot.slane %v1022, 5
        %v1646 = vsel %vm784, %v1644, %v1645
        %v1647 = vrot.slane %v1023, 5
        %v1648 = vrot.slane %v1647, 4
        %v1649 = vrot.slane %v1024, 5
        %v1650 = vsel %vm784, %v1648, %v1649
        %v1651 = vrot.slane %v1025, 5
        %v1652 = vrot.slane %v1651, 4
        %v1653 = vrot.slane %v1026, 5
        %v1654 = vsel %vm784, %v1652, %v1653
        %v1655 = vrot.slane %v1027, 5
        %v1656 = vrot.slane %v1655, 4
        %v1657 = vrot.slane %v1028, 5
        %v1658 = vsel %vm784, %v1656, %v1657
        %v1659 = vrot.slane %v1029, 5
        %v1660 = vrot.slane %v1659, 4
        %v1661 = vrot.slane %v1030, 5
        %v1662 = vsel %vm784, %v1660, %v1661
        %v1663 = vrot.slane %v1031, 5
        %v1664 = vrot.slane %v1663, 4
        %v1665 = vrot.slane %v1032, 5
        %v1666 = vsel %vm784, %v1664, %v1665
        %v1667 = vrot.slane %v1033, 5
        %v1668 = vrot.slane %v1667, 4
        %v1669 = vrot.slane %v1034, 5
        %v1670 = vsel %vm784, %v1668, %v1669
        %v1671 = vrot.slane %v1035, 5
        %v1672 = vrot.slane %v1671, 4
        %v1673 = vrot.slane %v1036, 5
        %v1674 = vsel %vm784, %v1672, %v1673
        %v1675 = vrot.slane %v1037, 5
        %v1676 = vrot.slane %v1675, 4
        %v1677 = vrot.slane %v1038, 5
        %v1678 = vsel %vm784, %v1676, %v1677
        %v1679 = vrot.slane %v1039, 5
        %v1680 = vrot.slane %v1679, 4
        %v1681 = vrot.slane %v1040, 5
        %v1682 = vsel %vm784, %v1680, %v1681
        %v1683 = vrot.slane %v1041, 5
        %v1684 = vrot.slane %v1683, 4
        %v1685 = vrot.slane %v1042, 5
        %v1686 = vsel %vm784, %v1684, %v1685
        %v1687 = vrot.slane %v1043, 5
        %v1688 = vrot.slane %v1687, 4
        %v1689 = vrot.slane %v1044, 5
        %v1690 = vsel %vm784, %v1688, %v1689
        %v1691 = vrot.slane %v1045, 5
        %v1692 = vrot.slane %v1691, 4
        %v1693 = vrot.slane %v1046, 5
        %v1694 = vsel %vm784, %v1692, %v1693
        %v1695 = vrot.slane %v1047, 5
        %v1696 = vrot.slane %v1695, 4
        %v1697 = vrot.slane %v1048, 5
        %v1698 = vsel %vm784, %v1696, %v1697
        %v1699 = vrot.slane %v1049, 5
        %v1700 = vrot.slane %v1699, 4
        %v1701 = vrot.slane %v1050, 5
        %v1702 = vsel %vm784, %v1700, %v1701
        %s1703 = scalar_lea.vmem %s182, 20
        %v1704 = vld [vmem:[%s1703] sm:$0xf]
        %v1705 = vunpack.c.l.b16 %v1642
        %v1706 = vunpack.c.l.b16 %v1646
        %v1707 = vunpack.c.l.b16 %v1650
        %v1708 = vunpack.c.l.b16 %v1654
        %v1709 = vunpack.c.l.b16 %v1658
        %v1710 = vunpack.c.l.b16 %v1662
        %v1711 = vunpack.c.l.b16 %v1666
        %v1712 = vunpack.c.l.b16 %v1670
        %v1713 = vunpack.c.l.b16 %v1674
        %v1714 = vunpack.c.l.b16 %v1678
        %v1715 = vunpack.c.l.b16 %v1682
        %v1716 = vunpack.c.l.b16 %v1686
        %v1717 = vunpack.c.l.b16 %v1690
        %v1718 = vunpack.c.l.b16 %v1694
        %v1719 = vunpack.c.l.b16 %v1698
        %v1720 = vunpack.c.l.b16 %v1702
        %v1721 = vpack.c.b16 %v1706, %v1705
        %v1722 = vpack.c.b16 %v1708, %v1707
        %v1723 = vpack.c.b16 %v1710, %v1709
        %v1724 = vpack.c.b16 %v1712, %v1711
        %v1725 = vpack.c.b16 %v1714, %v1713
        %v1726 = vpack.c.b16 %v1716, %v1715
        %v1727 = vpack.c.b16 %v1718, %v1717
        %v1728 = vpack.c.b16 %v1720, %v1719
        %v1730 = vsel %vm476, %v1721, 0
        %v1733 = vsel %vm476, %v1722, 0
        %v1736 = vsel %vm476, %v1723, 0
        %v1739 = vsel %vm476, %v1724, 0
        %v1742 = vsel %vm476, %v1725, 0
        %v1745 = vsel %vm476, %v1726, 0
        %v1748 = vsel %vm476, %v1727, 0
        %v1751 = vsel %vm476, %v1728, 0
        %v1754 = vsel %vm501, %v1704, 0
        %1756 = vmatprep.subr.bf16.mxu0 0
        %1757 = vmatpush1.bf16.msra.mxu0 %v1754
        %1758 = vmatprep.subr.bf16.mxu0 0
        %1759 = vmatpush1.bf16.msra.mxu0 0
        %1760 = vmatprep.subr.bf16.mxu0 0
        %1761 = vmatpush1.bf16.msra.mxu0 0
        %1762 = vmatprep.subr.bf16.mxu0 0
        %1763 = vmatpush1.bf16.msra.mxu0 0
        %1764 = vmatprep.subr.bf16.mxu0 0
        %1765 = vmatpush1.bf16.msra.mxu0 0
        %1766 = vmatprep.subr.bf16.mxu0 0
        %1767 = vmatpush1.bf16.msra.mxu0 0
        %1768 = vmatprep.subr.bf16.mxu0 0
        %1769 = vmatpush1.bf16.msra.mxu0 0
        %1770 = vmatprep.subr.bf16.mxu0 0
        %1771 = vmatpush1.bf16.msra.mxu0 0
        %1772 = vmatprep.subr.bf16.mxu0 0
        %1773 = vmatpush1.bf16.msra.mxu0 0
        %1774 = vmatprep.subr.bf16.mxu0 0
        %1775 = vmatpush1.bf16.msra.mxu0 0
        %1776 = vmatprep.subr.bf16.mxu0 0
        %1777 = vmatpush1.bf16.msra.mxu0 0
        %1778 = vmatprep.subr.bf16.mxu0 0
        %1779 = vmatpush1.bf16.msra.mxu0 0
        %1780 = vmatprep.subr.bf16.mxu0 0
        %1781 = vmatpush1.bf16.msra.mxu0 0
        %1782 = vmatprep.subr.bf16.mxu0 0
        %1783 = vmatpush1.bf16.msra.mxu0 0
        %1784 = vmatprep.subr.bf16.mxu0 0
        %1785 = vmatpush1.bf16.msra.mxu0 0
        %1786 = vmatprep.subr.bf16.mxu0 0
        %1787 = vmatpush1.bf16.msra.mxu0 0
        %1788 = vmatprep.mubr.bf16.mxu0 0
        %1789 = vmatmul.mubr.bf16.gmra.mrb[0].mxu0 %v1730
        %v1790 = vpop.f32.mrb[0].mxu0
        %v1791 = vadd.f32 0.0, %v1790
        %v1792 = vpop.f32.mrb[0].mxu0
        %v1793 = vpop.f32.mrb[0].mxu0
        %v1794 = vadd.f32 0.0, %v1793
        %v1795 = vpop.f32.mrb[0].mxu0
        %1796 = vmatprep.mubr.bf16.mxu0 0
        %1797 = vmatmul.mubr.bf16.gmra.mrb[0].mxu0 %v1733
        %v1798 = vpop.f32.mrb[0].mxu0
        %v1799 = vadd.f32 0.0, %v1798
        %v1800 = vpop.f32.mrb[0].mxu0
        %v1801 = vpop.f32.mrb[0].mxu0
        %v1802 = vadd.f32 0.0, %v1801
        %v1803 = vpop.f32.mrb[0].mxu0
        %1804 = vmatprep.mubr.bf16.mxu0 0
        %1805 = vmatmul.mubr.bf16.gmra.mrb[0].mxu0 %v1736
        %v1806 = vpop.f32.mrb[0].mxu0
        %v1807 = vadd.f32 0.0, %v1806
        %v1808 = vpop.f32.mrb[0].mxu0
        %v1809 = vpop.f32.mrb[0].mxu0
        %v1810 = vadd.f32 0.0, %v1809
        %v1811 = vpop.f32.mrb[0].mxu0
        %1812 = vmatprep.mubr.bf16.mxu0 0
        %1813 = vmatmul.mubr.bf16.gmra.mrb[0].mxu0 %v1739
        %v1814 = vpop.f32.mrb[0].mxu0
        %v1815 = vadd.f32 0.0, %v1814
        %v1816 = vpop.f32.mrb[0].mxu0
        %v1817 = vpop.f32.mrb[0].mxu0
        %v1818 = vadd.f32 0.0, %v1817
        %v1819 = vpop.f32.mrb[0].mxu0
        %1820 = vmatprep.mubr.bf16.mxu0 0
        %1821 = vmatmul.mubr.bf16.gmra.mrb[0].mxu0 %v1742
        %v1822 = vpop.f32.mrb[0].mxu0
        %v1823 = vadd.f32 0.0, %v1822
        %v1824 = vpop.f32.mrb[0].mxu0
        %v1825 = vpop.f32.mrb[0].mxu0
        %v1826 = vadd.f32 0.0, %v1825
        %v1827 = vpop.f32.mrb[0].mxu0
        %1828 = vmatprep.mubr.bf16.mxu0 0
        %1829 = vmatmul.mubr.bf16.gmra.mrb[0].mxu0 %v1745
        %v1830 = vpop.f32.mrb[0].mxu0
        %v1831 = vadd.f32 0.0, %v1830
        %v1832 = vpop.f32.mrb[0].mxu0
        %v1833 = vpop.f32.mrb[0].mxu0
        %v1834 = vadd.f32 0.0, %v1833
        %v1835 = vpop.f32.mrb[0].mxu0
        %1836 = vmatprep.mubr.bf16.mxu0 0
        %1837 = vmatmul.mubr.bf16.gmra.mrb[0].mxu0 %v1748
        %v1838 = vpop.f32.mrb[0].mxu0
        %v1839 = vadd.f32 0.0, %v1838
        %v1840 = vpop.f32.mrb[0].mxu0
        %v1841 = vpop.f32.mrb[0].mxu0
        %v1842 = vadd.f32 0.0, %v1841
        %v1843 = vpop.f32.mrb[0].mxu0
        %1844 = vmatprep.mubr.bf16.mxu0 0
        %1845 = vmatmul.mubr.bf16.gmra.mrb[0].mxu0 %v1751
        %v1846 = vpop.f32.mrb[0].mxu0
        %v1847 = vadd.f32 0.0, %v1846
        %v1848 = vpop.f32.mrb[0].mxu0
        %v1849 = vpop.f32.mrb[0].mxu0
        %v1850 = vadd.f32 0.0, %v1849
        %v1851 = vpop.f32.mrb[0].mxu0
        %1852 = vdwg.mxu0
        %v1853 = vadd.f32 %v1607, %v1791
        %v1854 = vadd.f32 %v1608, %v1794
        %v1855 = vadd.f32 %v1609, %v1799
        %v1856 = vadd.f32 %v1610, %v1802
        %v1857 = vadd.f32 %v1611, %v1807
        %v1858 = vadd.f32 %v1612, %v1810
        %v1859 = vadd.f32 %v1613, %v1815
        %v1860 = vadd.f32 %v1614, %v1818
        %v1861 = vadd.f32 %v1615, %v1823
        %v1862 = vadd.f32 %v1616, %v1826
        %v1863 = vadd.f32 %v1617, %v1831
        %v1864 = vadd.f32 %v1618, %v1834
        %v1865 = vadd.f32 %v1619, %v1839
        %v1866 = vadd.f32 %v1620, %v1842
        %v1867 = vadd.f32 %v1621, %v1847
        %v1868 = vadd.f32 %v1622, %v1850
        %v1869 = vld [vmem:[%s2] sm:$0x1]
        %v1871 = vlaneseq
        %v1872 = vshrl.u32 %v1871, 7
        %v1873 = vsub.s32 0, %v1872
        %v1874 = vrot.slane %v1869, %v1873
        %v1876 = vadd.f32 %v1853, %v1874
        %v1877 = vadd.f32 %v1854, %v1874
        %v1878 = vadd.f32 %v1855, %v1874
        %v1879 = vadd.f32 %v1856, %v1874
        %v1880 = vadd.f32 %v1857, %v1874
        %v1881 = vadd.f32 %v1858, %v1874
        %v1882 = vadd.f32 %v1859, %v1874
        %v1883 = vadd.f32 %v1860, %v1874
        %v1884 = vadd.f32 %v1861, %v1874
        %v1885 = vadd.f32 %v1862, %v1874
        %v1886 = vadd.f32 %v1863, %v1874
        %v1887 = vadd.f32 %v1864, %v1874
        %v1888 = vadd.f32 %v1865, %v1874
        %v1889 = vadd.f32 %v1866, %v1874
        %v1890 = vadd.f32 %v1867, %v1874
        %v1891 = vadd.f32 %v1868, %v1874
        %v1892 = vmax.f32 %v1876, 0.0
        %v1893 = vmax.f32 %v1877, 0.0
        %v1894 = vmax.f32 %v1878, 0.0
        %v1895 = vmax.f32 %v1879, 0.0
        %v1896 = vmax.f32 %v1880, 0.0
        %v1897 = vmax.f32 %v1881, 0.0
        %v1898 = vmax.f32 %v1882, 0.0
        %v1899 = vmax.f32 %v1883, 0.0
        %v1900 = vmax.f32 %v1884, 0.0
        %v1901 = vmax.f32 %v1885, 0.0
        %v1902 = vmax.f32 %v1886, 0.0
        %v1903 = vmax.f32 %v1887, 0.0
        %v1904 = vmax.f32 %v1888, 0.0
        %v1905 = vmax.f32 %v1889, 0.0
        %v1906 = vmax.f32 %v1890, 0.0
        %v1907 = vmax.f32 %v1891, 0.0
        %vm1908 = vcmask 261120
        %1909 = vst.msk [vmem:[%s177] sm:$0xff] %vm1908, %v1892
        %1910 = vst.msk [vmem:[%s177 + $0x8] sm:$0xff] %vm1908, %v1893
        %1911 = vst.msk [vmem:[%s177 + $0x10] sm:$0xff] %vm1908, %v1894
        %1912 = vst.msk [vmem:[%s177 + $0x18] sm:$0xff] %vm1908, %v1895
        %1913 = vst.msk [vmem:[%s177 + $0x20] sm:$0xff] %vm1908, %v1896
        %1914 = vst.msk [vmem:[%s177 + $0x28] sm:$0xff] %vm1908, %v1897
        %1915 = vst.msk [vmem:[%s177 + $0x30] sm:$0xff] %vm1908, %v1898
        %1916 = vst.msk [vmem:[%s177 + $0x38] sm:$0xff] %vm1908, %v1899
        %1917 = vst.msk [vmem:[%s177 + $0x40] sm:$0xff] %vm1908, %v1900
        %1918 = vst.msk [vmem:[%s177 + $0x48] sm:$0xff] %vm1908, %v1901
        %1919 = vst.msk [vmem:[%s177 + $0x50] sm:$0xff] %vm1908, %v1902
        %1920 = vst.msk [vmem:[%s177 + $0x58] sm:$0xff] %vm1908, %v1903
        %1921 = vst.msk [vmem:[%s177 + $0x60] sm:$0xff] %vm1908, %v1904
        %1922 = vst.msk [vmem:[%s177 + $0x68] sm:$0xff] %vm1908, %v1905
        %1923 = vst.msk [vmem:[%s177 + $0x70] sm:$0xff] %vm1908, %v1906
        %1924 = vst.msk [vmem:[%s177 + $0x78] sm:$0xff] %vm1908, %v1907
        %s1925 = sand.u32 %s107, 1
        %s1926 = scalar_lea.sflag [#allocation3], %s1925
        %s1927 = sand.u32 %s107, 1
        %s1928 = smul.addr %s1927, 128
        %s1929 = scalar_lea.vmem [#allocation2], %s1928
        // Predicated region
        $region33: #{tpu_custom_call.1} parent=31 // pred_check
          %p1930 = pneg %p117
        $region34: #{tpu_custom_call.1} parent=31 // pred_check_branch
          %1932 = sbr.rel (%p1930) target = $region36
        $region35: #{tpu_custom_call.1} parent=31 // pred_region
          %s1933 = smul.u32 8, %s22
          %s1935 = ssub.s32 2048, 2048
          %1936 = vsyncadd %s1926, %s1935
          %s1937 = smul.addr %s1933, 2
          %s1938 = sadd.s32 %s21, %s1937
          %s1939 = smul.addr %s1938, 128
          %s1940 = scalar_lea.hbm %s3, %s1939
          %s1941 = sshll.u32 %s1929, 4
          %s1942 = int_to_ptr.vmem [resolvable:$true] %s1941
          %1947 = dma.vmem_to_hbm [thread:$0]  %s1942, 2048, %s1940, %s1926, 128, 256, 8
        $region36: #{tpu_custom_call.1} parent=31 // pred_fallthru
          _
      $region32: #{tpu_custom_call.1} parent=5 // pred_fallthru
        _
      %p1948 = scmp.le.s32.totalorder 2, %s12
      // Predicated region
      $region37: #{tpu_custom_call.1} parent=5 // pred_check
        %p1949 = pneg %p1948
      $region38: #{tpu_custom_call.1} parent=5 // pred_check_branch
        %1951 = sbr.rel (%p1949) target = $region40
      $region39: #{tpu_custom_call.1} parent=5 // pred_region
        %s1952 = ssub.s32 %s12, 2
        // Predicated region
        $region41: #{tpu_custom_call.1} parent=39 // pred_check
          %p1953 = pneg %p123
        $region42: #{tpu_custom_call.1} parent=39 // pred_check_branch
          %1955 = sbr.rel (%p1953) target = $region44
        $region43: #{tpu_custom_call.1} parent=39 // pred_region
          %s1956 = sand.u32 %s108, 1
          %s1957 = scalar_lea.sflag [#allocation3], %s1956
          %s1958 = sand.u32 %s108, 1
          %s1959 = smul.addr %s1958, 128
          %s1960 = scalar_lea.vmem [#allocation2], %s1959
          %1961 = dma.done %s1957, 2048
        $region44: #{tpu_custom_call.1} parent=39 // pred_fallthru
          _
      $region40: #{tpu_custom_call.1} parent=5 // pred_fallthru
        _
    $region6: #{tpu_custom_call.1} parent=1 // loop_footer
      %s16 = sadd.s32 1, %s12
    $region7: #{tpu_custom_call.1} parent=1 // loop_footer_branch
      %11 = sbr.rel target = $region3
    $region8: #{tpu_custom_call.1} parent=1 // loop_exit
      _
    %1962 = vsyncpa [#allocation3], 1
    %s1963 = scalar_lea.sflag [#allocation3], 1
    %1964 = vsyncpa %s1963, 1

</llo_original>
